<compile_context>
chip_gen: v7x
topology: tpu7x:2x2x1
jax: 0.10.0
libtpu: 0.0.40
codegen_flags: <defaults>
</compile_context>

<pallas_src>
import jax
import jax.numpy as jnp
import numpy as np
from jax.experimental import pallas as pl
from jax.experimental.pallas import tpu as pltpu

# ----- synthetic config (small, consistent with the module) -----
B_TOTAL = 16       # total documents per call (batched per review)
BT = 8             # batch tile per grid step (fills f32 sublanes)
S = 8              # number of sentences (sentence-level sequence length)
D = 32             # word_hidden_dim (input feature dim)
H = 16             # sent_hidden_dim // 2 (per-direction hidden, bidirectional)
SH = 2 * H         # sent_hidden_dim
P = 32             # pre_pooling_dim
G4 = 4 * H         # gates per direction
G8 = 8 * H         # fused fwd+bwd gate width (= 128, lane-dense)
OUT_PAD = 128      # lane-dense padded width for the text_x output


def sent_level_rnn_kernel(x_ref, mask_ref,
                          wih_ref, b_ref, whh_ref,
                          wp_ref, bp_ref, wv_ref, bv_ref,
                          out_ref, hseq_ref):
    wih = wih_ref[...]                                    # (D, 8H)  bf16, gate-interleaved
    b = b_ref[...]                                        # (1, 8H)  f32,  gate-interleaved
    whh = whh_ref[...]                                    # (2H, 8H) bf16, gate-interleaved block-diag

    # ---- input projections per step (independent of the recurrence chain) ----
    gx = [jnp.dot(x_ref[:, t * D:(t + 1) * D].astype(jnp.bfloat16), wih,
                  preferred_element_type=jnp.float32) + b
          for t in range(S)]                              # S x (BT, 8H)

    # Pre-merge fwd(t) with bwd(S-1-t): one vselect per step, done before the loop.
    lane = jax.lax.broadcasted_iota(jnp.int32, (BT, G8), 1)
    is_bwd = (lane % SH) >= H                             # bwd lanes in interleaved layout
    gxm = [jnp.where(is_bwd, gx[S - 1 - t], gx[t]) for t in range(S)]

    # ---- merged fwd+bwd recurrence, fully unrolled (S is static) --------------
    h = jnp.zeros((BT, SH), jnp.float32)                  # packed [h_fwd | h_bwd]
    c = jnp.zeros((BT, SH), jnp.float32)                  # packed [c_fwd | c_bwd]
    h_fwd = [None] * S
    h_bwd = [None] * S
    for t in range(S):                                    # static unroll, state stays in vregs
        g = gxm[t] + jnp.dot(h.astype(jnp.bfloat16), whh,
                             preferred_element_type=jnp.float32)              # (BT, 8H)
        # gate-interleaved layout -> each gate is one contiguous 32-lane slice
        i_g = jax.nn.sigmoid(g[:, 0 * SH:1 * SH])
        f_g = jax.nn.sigmoid(g[:, 1 * SH:2 * SH])
        c_g = jnp.tanh(g[:, 2 * SH:3 * SH])
        o_g = jax.nn.sigmoid(g[:, 3 * SH:4 * SH])
        c = f_g * c + i_g * c_g
        h = o_g * jnp.tanh(c)
        h_fwd[t] = h[:, :H]                               # forward hidden at time t
        h_bwd[S - 1 - t] = h[:, H:]                       # backward hidden at time S-1-t

    # Per-timestep bidirectional hidden (BT, 2H); lane-dense (BT, S*2H) slab written once.
    h_bi = [jnp.concatenate([h_fwd[t], h_bwd[t]], axis=-1) for t in range(S)]
    hseq = jnp.concatenate(h_bi, axis=-1)                 # (BT, S*2H) = (8, 256)
    hseq_ref[...] = hseq

    # ---- sentence attention: two lane-dense matmuls on the slab ---------------
    states = jnp.tanh(jnp.dot(hseq.astype(jnp.bfloat16), wp_ref[...],
                              preferred_element_type=jnp.float32) + bp_ref[...])   # (BT, S*P)
    logits = jnp.dot(states, wv_ref[...],
                     preferred_element_type=jnp.float32) + bv_ref[...]             # (BT, S)
    logits = jnp.where(mask_ref[...] == 0, -1e9, logits)
    logits = logits - jnp.max(logits, axis=-1, keepdims=True)
    e = jnp.exp(logits)
    w = e * pl.reciprocal(jnp.sum(e, axis=-1, keepdims=True), approx=True)          # softmax

    # Weighted sum over timesteps (8 VPU FMAs).
    acc = jnp.zeros((BT, SH), jnp.float32)
    for t in range(S):
        acc = acc + w[:, t:t + 1] * h_bi[t]

    # Lane-dense padded store (unmasked vst); wrapper slices [:, :SH].
    out_ref[...] = jnp.concatenate(
        [acc, jnp.zeros((BT, OUT_PAD - SH), jnp.float32)], axis=-1)


def prepare_params(params):
    """Fuse / permute / pre-cast PyTorch-style weights for the kernel (done once, host-side)."""
    wih_f, whh_f, bf, wih_b, whh_b, bb, wp, bp, wv, bv = params

    def interleave_gates(w_f, w_b):
        # (n,4H),(n,4H) -> (n,8H) with layout [i_f i_b | f_f f_b | g_f g_b | o_f o_b]
        cols = []
        for k in range(4):
            cols.append(w_f[:, k * H:(k + 1) * H])
            cols.append(w_b[:, k * H:(k + 1) * H])
        return jnp.concatenate(cols, axis=1)

    wih_fused = interleave_gates(wih_f, wih_b).astype(jnp.bfloat16)           # (D, 8H)
    b_fused = interleave_gates(bf, bb).astype(jnp.float32)                    # (1, 8H)

    # Block-diagonal hidden weight in the same gate-interleaved column layout.
    whh_bd = jnp.zeros((SH, G8), jnp.float32)
    for k in range(4):
        whh_bd = whh_bd.at[:H, (2 * k) * H:(2 * k + 1) * H].set(whh_f[:, k * H:(k + 1) * H])
        whh_bd = whh_bd.at[H:, (2 * k + 1) * H:(2 * k + 2) * H].set(whh_b[:, k * H:(k + 1) * H])
    whh_bd = whh_bd.astype(jnp.bfloat16)                                      # (2H, 8H)

    # Block-diagonal attention weights over the S timesteps of the hidden slab.
    wp_bd = jnp.zeros((S * SH, S * P), jnp.float32)
    wv_bd = jnp.zeros((S * P, S), jnp.float32)
    for t in range(S):
        wp_bd = wp_bd.at[t * SH:(t + 1) * SH, t * P:(t + 1) * P].set(wp)
        wv_bd = wv_bd.at[t * P:(t + 1) * P, t:t + 1].set(wv)
    bp_tiled = jnp.tile(bp, (1, S)).astype(jnp.float32)                       # (1, S*P)

    return (wih_fused, b_fused, whh_bd,
            wp_bd.astype(jnp.bfloat16), bp_tiled,
            wv_bd.astype(jnp.float32), bv.astype(jnp.float32))


@jax.jit
def sent_level_rnn(text_bsd, mask_bs, fused_params):
    """text_bsd: (B, S, D) f32 batch-first, mask_bs: (B, S) int (1=keep, 0=mask)."""
    Bn = text_bsd.shape[0]
    assert Bn % BT == 0
    text2d = text_bsd.reshape(Bn, S * D).astype(jnp.float32)   # flatten in wrapper (free view)
    mask2d = mask_bs.astype(jnp.int32)

    weight_specs = [pl.BlockSpec(p.shape, lambda i: (0, 0)) for p in fused_params]
    out_shapes = (jax.ShapeDtypeStruct((Bn, OUT_PAD), jnp.float32),
                  jax.ShapeDtypeStruct((Bn, S * SH), jnp.float32))

    text_x_pad, hseq = pl.pallas_call(
        sent_level_rnn_kernel,
        out_shape=out_shapes,
        grid_spec=pltpu.PrefetchScalarGridSpec(
            num_scalar_prefetch=0,
            grid=(Bn // BT,),
            in_specs=[pl.BlockSpec((BT, S * D), lambda i: (i, 0)),
                      pl.BlockSpec((BT, S), lambda i: (i, 0))] + weight_specs,
            out_specs=(pl.BlockSpec((BT, OUT_PAD), lambda i: (i, 0)),
                       pl.BlockSpec((BT, S * SH), lambda i: (i, 0)))),
        compiler_params=pltpu.CompilerParams(dimension_semantics=("parallel",)),
    )(text2d, mask2d, *fused_params)

    text_x = text_x_pad[:, :SH]             # drop lane padding
    h_text = hseq.reshape(Bn, S, SH)        # batch-first (B, S, 2H); no transpose needed
    return text_x, h_text


# ----- pure-JAX f32 reference for correctness check -----
def ref_forward(text, mask, params):
    wih_f, whh_f, bf, wih_b, whh_b, bb, wp, bp, wv, bv = params
    Bn = text.shape[0]
    x = jnp.transpose(text, (1, 0, 2))                # (S, B, D)

    def run(wih, whh, b, reverse):
        h = jnp.zeros((Bn, H), jnp.float32)
        c = jnp.zeros((Bn, H), jnp.float32)
        outs = [None] * S
        idxs = range(S - 1, -1, -1) if reverse else range(S)
        for t in idxs:
            g = x[t] @ wih + b + h @ whh
            i = jax.nn.sigmoid(g[:, :H])
            f = jax.nn.sigmoid(g[:, H:2 * H])
            gg = jnp.tanh(g[:, 2 * H:3 * H])
            o = jax.nn.sigmoid(g[:, 3 * H:])
            c = f * c + i * gg
            h = o * jnp.tanh(c)
            outs[t] = h
        return jnp.stack(outs, 0)

    hf = run(wih_f, whh_f, bf, False)
    hb = run(wih_b, whh_b, bb, True)
    h_all = jnp.concatenate([hf, hb], -1)             # (S, B, 2H)
    states = jnp.tanh(h_all @ wp + bp)                # (S, B, P)
    logits = (states @ wv)[..., 0] + bv[0, 0]         # (S, B)
    logits = jnp.where(mask.T == 0, -1e9, logits)
    w = jax.nn.softmax(logits, axis=0)
    out = jnp.sum(w[:, :, None] * h_all, axis=0)      # (B, 2H)
    return out, jnp.transpose(h_all, (1, 0, 2))


if __name__ == "__main__":
    key = jax.random.PRNGKey(0)
    ks = jax.random.split(key, 12)

    def u(k, shape):
        return jax.random.uniform(k, shape, jnp.float32, -0.1, 0.1)

    # LSTM params (PyTorch W_ih:(4H,D), W_hh:(4H,H) stored pre-transposed; b = b_ih + b_hh)
    wih_f = u(ks[0], (D, G4)); whh_f = u(ks[1], (H, G4)); bf = u(ks[2], (1, G4))
    wih_b = u(ks[3], (D, G4)); whh_b = u(ks[4], (H, G4)); bb = u(ks[5], (1, G4))
    # Attention params (pre_pooling_linear and pooling_linear), pre-transposed.
    wp = u(ks[6], (SH, P)); bp = u(ks[7], (1, P))
    wv = u(ks[8], (P, 1)); bv = u(ks[9], (1, 1))
    params = (wih_f, whh_f, bf, wih_b, whh_b, bb, wp, bp, wv, bv)

    text = jax.random.normal(ks[10], (B_TOTAL, S, D), jnp.float32)     # sentence vectors
    mask = jnp.ones((B_TOTAL, S), jnp.int32)
    mask = mask.at[1, -2:].set(0).at[5, -3:].set(0).at[12, -1:].set(0)

    fused = prepare_params(params)
    text_x, h_text = jax.block_until_ready(sent_level_rnn(text, mask, fused))

    ref_x, ref_h = ref_forward(text, mask, params)
    # bf16 MXU inputs with f32 accumulation -> slightly looser tolerance than pure f32.
    np.testing.assert_allclose(np.asarray(text_x), np.asarray(ref_x), atol=2e-2, rtol=2e-2)
    np.testing.assert_allclose(np.asarray(h_text), np.asarray(ref_h), atol=2e-2, rtol=2e-2)

    print("KERNEL_OK")
</pallas_src>

<mosaic_0001>
module attributes {stable_mosaic.version = 11 : i64} {
  func.func @sent_level_rnn_kernel(%arg0: i32, %arg1: memref<8x256xf32, #tpu.memory_space<vmem>>, %arg2: memref<8x8xi32, #tpu.memory_space<vmem>>, %arg3: memref<32x128xbf16, #tpu.memory_space<vmem>>, %arg4: memref<1x128xf32, #tpu.memory_space<vmem>>, %arg5: memref<32x128xbf16, #tpu.memory_space<vmem>>, %arg6: memref<256x256xbf16, #tpu.memory_space<vmem>>, %arg7: memref<1x256xf32, #tpu.memory_space<vmem>>, %arg8: memref<256x8xf32, #tpu.memory_space<vmem>>, %arg9: memref<1x1xf32, #tpu.memory_space<vmem>>, %arg10: memref<8x128xf32, #tpu.memory_space<vmem>>, %arg11: memref<8x256xf32, #tpu.memory_space<vmem>>) attributes {dimension_semantics = [#tpu.dimension_semantics<parallel>], iteration_bounds = array<i64: 2>, scalar_prefetch = 0 : i64, scratch_operands = 0 : i64, tpu.core_type = #tpu.core_type<tc>, window_params = [{transform_indices = @transform_0, window_bounds = array<i64: 8, 256>}, {transform_indices = @transform_1, window_bounds = array<i64: 8, 8>}, {pipeline_mode = #tpu.pipeline_mode<synchronous>, transform_indices = @transform_2, window_bounds = array<i64: 32, 128>}, {pipeline_mode = #tpu.pipeline_mode<synchronous>, transform_indices = @transform_3, window_bounds = array<i64: 1, 128>}, {pipeline_mode = #tpu.pipeline_mode<synchronous>, transform_indices = @transform_4, window_bounds = array<i64: 32, 128>}, {pipeline_mode = #tpu.pipeline_mode<synchronous>, transform_indices = @transform_5, window_bounds = array<i64: 256, 256>}, {pipeline_mode = #tpu.pipeline_mode<synchronous>, transform_indices = @transform_6, window_bounds = array<i64: 1, 256>}, {pipeline_mode = #tpu.pipeline_mode<synchronous>, transform_indices = @transform_7, window_bounds = array<i64: 256, 8>}, {pipeline_mode = #tpu.pipeline_mode<synchronous>, transform_indices = @transform_8, window_bounds = array<i64: 1, 1>}, {transform_indices = @transform_9, window_bounds = array<i64: 8, 128>}, {transform_indices = @transform_10, window_bounds = array<i64: 8, 256>}]} {
    %c0 = arith.constant 0 : index
    %c0_0 = arith.constant 0 : index
    %0 = vector.load %arg3[%c0, %c0_0] : memref<32x128xbf16, #tpu.memory_space<vmem>>, vector<32x128xbf16>
    %c0_1 = arith.constant 0 : index
    %c0_2 = arith.constant 0 : index
    %1 = vector.load %arg4[%c0_1, %c0_2] : memref<1x128xf32, #tpu.memory_space<vmem>>, vector<1x128xf32>
    %c0_3 = arith.constant 0 : index
    %c0_4 = arith.constant 0 : index
    %2 = vector.load %arg5[%c0_3, %c0_4] : memref<32x128xbf16, #tpu.memory_space<vmem>>, vector<32x128xbf16>
    %c0_5 = arith.constant 0 : index
    %c0_6 = arith.constant 0 : index
    %3 = vector.load %arg1[%c0_5, %c0_6] : memref<8x256xf32, #tpu.memory_space<vmem>>, vector<8x32xf32>
    %4 = arith.truncf %3 : vector<8x32xf32> to vector<8x32xbf16>
    %cst = arith.constant dense<0.000000e+00> : vector<8x128xf32>
    %5 = tpu.matmul %4, %0, %cst {dimension_numbers = #tpu.dot_dimension_numbers<[1], [0], [0], [1], [0, 0, 1, 1], [], []>} : vector<8x32xbf16>, vector<32x128xbf16>, vector<8x128xf32> -> vector<8x128xf32>
    %6 = vector.broadcast %1 : vector<1x128xf32> to vector<8x128xf32>
    %7 = arith.addf %5, %6 : vector<8x128xf32>
    %c0_7 = arith.constant 0 : index
    %c32 = arith.constant 32 : index
    %8 = vector.load %arg1[%c0_7, %c32] : memref<8x256xf32, #tpu.memory_space<vmem>>, vector<8x32xf32>
    %9 = arith.truncf %8 : vector<8x32xf32> to vector<8x32xbf16>
    %cst_8 = arith.constant dense<0.000000e+00> : vector<8x128xf32>
    %10 = tpu.matmul %9, %0, %cst_8 {dimension_numbers = #tpu.dot_dimension_numbers<[1], [0], [0], [1], [0, 0, 1, 1], [], []>} : vector<8x32xbf16>, vector<32x128xbf16>, vector<8x128xf32> -> vector<8x128xf32>
    %11 = vector.broadcast %1 : vector<1x128xf32> to vector<8x128xf32>
    %12 = arith.addf %10, %11 : vector<8x128xf32>
    %c0_9 = arith.constant 0 : index
    %c64 = arith.constant 64 : index
    %13 = vector.load %arg1[%c0_9, %c64] : memref<8x256xf32, #tpu.memory_space<vmem>>, vector<8x32xf32>
    %14 = arith.truncf %13 : vector<8x32xf32> to vector<8x32xbf16>
    %cst_10 = arith.constant dense<0.000000e+00> : vector<8x128xf32>
    %15 = tpu.matmul %14, %0, %cst_10 {dimension_numbers = #tpu.dot_dimension_numbers<[1], [0], [0], [1], [0, 0, 1, 1], [], []>} : vector<8x32xbf16>, vector<32x128xbf16>, vector<8x128xf32> -> vector<8x128xf32>
    %16 = vector.broadcast %1 : vector<1x128xf32> to vector<8x128xf32>
    %17 = arith.addf %15, %16 : vector<8x128xf32>
    %c0_11 = arith.constant 0 : index
    %c96 = arith.constant 96 : index
    %18 = vector.load %arg1[%c0_11, %c96] : memref<8x256xf32, #tpu.memory_space<vmem>>, vector<8x32xf32>
    %19 = arith.truncf %18 : vector<8x32xf32> to vector<8x32xbf16>
    %cst_12 = arith.constant dense<0.000000e+00> : vector<8x128xf32>
    %20 = tpu.matmul %19, %0, %cst_12 {dimension_numbers = #tpu.dot_dimension_numbers<[1], [0], [0], [1], [0, 0, 1, 1], [], []>} : vector<8x32xbf16>, vector<32x128xbf16>, vector<8x128xf32> -> vector<8x128xf32>
    %21 = vector.broadcast %1 : vector<1x128xf32> to vector<8x128xf32>
    %22 = arith.addf %20, %21 : vector<8x128xf32>
    %c0_13 = arith.constant 0 : index
    %c128 = arith.constant 128 : index
    %23 = vector.load %arg1[%c0_13, %c128] : memref<8x256xf32, #tpu.memory_space<vmem>>, vector<8x32xf32>
    %24 = arith.truncf %23 : vector<8x32xf32> to vector<8x32xbf16>
    %cst_14 = arith.constant dense<0.000000e+00> : vector<8x128xf32>
    %25 = tpu.matmul %24, %0, %cst_14 {dimension_numbers = #tpu.dot_dimension_numbers<[1], [0], [0], [1], [0, 0, 1, 1], [], []>} : vector<8x32xbf16>, vector<32x128xbf16>, vector<8x128xf32> -> vector<8x128xf32>
    %26 = vector.broadcast %1 : vector<1x128xf32> to vector<8x128xf32>
    %27 = arith.addf %25, %26 : vector<8x128xf32>
    %c0_15 = arith.constant 0 : index
    %c160 = arith.constant 160 : index
    %28 = vector.load %arg1[%c0_15, %c160] : memref<8x256xf32, #tpu.memory_space<vmem>>, vector<8x32xf32>
    %29 = arith.truncf %28 : vector<8x32xf32> to vector<8x32xbf16>
    %cst_16 = arith.constant dense<0.000000e+00> : vector<8x128xf32>
    %30 = tpu.matmul %29, %0, %cst_16 {dimension_numbers = #tpu.dot_dimension_numbers<[1], [0], [0], [1], [0, 0, 1, 1], [], []>} : vector<8x32xbf16>, vector<32x128xbf16>, vector<8x128xf32> -> vector<8x128xf32>
    %31 = vector.broadcast %1 : vector<1x128xf32> to vector<8x128xf32>
    %32 = arith.addf %30, %31 : vector<8x128xf32>
    %c0_17 = arith.constant 0 : index
    %c192 = arith.constant 192 : index
    %33 = vector.load %arg1[%c0_17, %c192] : memref<8x256xf32, #tpu.memory_space<vmem>>, vector<8x32xf32>
    %34 = arith.truncf %33 : vector<8x32xf32> to vector<8x32xbf16>
    %cst_18 = arith.constant dense<0.000000e+00> : vector<8x128xf32>
    %35 = tpu.matmul %34, %0, %cst_18 {dimension_numbers = #tpu.dot_dimension_numbers<[1], [0], [0], [1], [0, 0, 1, 1], [], []>} : vector<8x32xbf16>, vector<32x128xbf16>, vector<8x128xf32> -> vector<8x128xf32>
    %36 = vector.broadcast %1 : vector<1x128xf32> to vector<8x128xf32>
    %37 = arith.addf %35, %36 : vector<8x128xf32>
    %c0_19 = arith.constant 0 : index
    %c224 = arith.constant 224 : index
    %38 = vector.load %arg1[%c0_19, %c224] : memref<8x256xf32, #tpu.memory_space<vmem>>, vector<8x32xf32>
    %39 = arith.truncf %38 : vector<8x32xf32> to vector<8x32xbf16>
    %cst_20 = arith.constant dense<0.000000e+00> : vector<8x128xf32>
    %40 = tpu.matmul %39, %0, %cst_20 {dimension_numbers = #tpu.dot_dimension_numbers<[1], [0], [0], [1], [0, 0, 1, 1], [], []>} : vector<8x32xbf16>, vector<32x128xbf16>, vector<8x128xf32> -> vector<8x128xf32>
    %41 = vector.broadcast %1 : vector<1x128xf32> to vector<8x128xf32>
    %42 = arith.addf %40, %41 : vector<8x128xf32>
    %43 = tpu.iota {dimensions = array<i32: 1>} : vector<8x128xi32>
    %c32_i32 = arith.constant 32 : i32
    %c0_i32 = arith.constant 0 : i32
    %44 = arith.cmpi eq, %c32_i32, %c0_i32 : i32
    %c1_i32 = arith.constant 1 : i32
    %45 = arith.select %44, %c1_i32, %c32_i32 : i32
    %46 = vector.broadcast %45 : i32 to vector<8x128xi32>
    %47 = arith.remsi %43, %46 : vector<8x128xi32>
    %c0_i32_21 = arith.constant 0 : i32
    %48 = vector.broadcast %c0_i32_21 : i32 to vector<8x128xi32>
    %49 = arith.cmpi ne, %47, %48 : vector<8x128xi32>
    %c0_i32_22 = arith.constant 0 : i32
    %50 = vector.broadcast %c0_i32_22 : i32 to vector<8x128xi32>
    %51 = arith.cmpi slt, %47, %50 : vector<8x128xi32>
    %c0_i32_23 = arith.constant 0 : i32
    %52 = arith.cmpi slt, %45, %c0_i32_23 : i32
    %53 = vector.broadcast %52 : i1 to vector<8x128xi1>
    %54 = vector.broadcast %53 : vector<8x128xi1> to vector<8x128xi1>
    %55 = arith.xori %51, %54 : vector<8x128xi1>
    %56 = arith.andi %55, %49 : vector<8x128xi1>
    %57 = vector.broadcast %45 : i32 to vector<8x128xi32>
    %58 = arith.addi %47, %57 : vector<8x128xi32>
    %59 = arith.select %56, %58, %47 : vector<8x128xi1>, vector<8x128xi32>
    %c16_i32 = arith.constant 16 : i32
    %60 = vector.broadcast %c16_i32 : i32 to vector<8x128xi32>
    %61 = arith.cmpi sge, %59, %60 : vector<8x128xi32>
    %62 = arith.select %61, %42, %7 : vector<8x128xi1>, vector<8x128xf32>
    %63 = arith.select %61, %37, %12 : vector<8x128xi1>, vector<8x128xf32>
    %64 = arith.select %61, %32, %17 : vector<8x128xi1>, vector<8x128xf32>
    %65 = arith.select %61, %27, %22 : vector<8x128xi1>, vector<8x128xf32>
    %66 = arith.select %61, %22, %27 : vector<8x128xi1>, vector<8x128xf32>
    %67 = arith.select %61, %17, %32 : vector<8x128xi1>, vector<8x128xf32>
    %68 = arith.select %61, %12, %37 : vector<8x128xi1>, vector<8x128xf32>
    %69 = arith.select %61, %7, %42 : vector<8x128xi1>, vector<8x128xf32>
    %cst_24 = arith.constant 0.000000e+00 : f32
    %70 = vector.broadcast %cst_24 : f32 to vector<8x32xf32>
    %cst_25 = arith.constant 0.000000e+00 : f32
    %71 = vector.broadcast %cst_25 : f32 to vector<8x32xf32>
    %72 = arith.truncf %70 : vector<8x32xf32> to vector<8x32xbf16>
    %cst_26 = arith.constant dense<0.000000e+00> : vector<8x128xf32>
    %73 = tpu.matmul %72, %2, %cst_26 {dimension_numbers = #tpu.dot_dimension_numbers<[1], [0], [0], [1], [0, 0, 1, 1], [], []>} : vector<8x32xbf16>, vector<32x128xbf16>, vector<8x128xf32> -> vector<8x128xf32>
    %74 = arith.addf %62, %73 : vector<8x128xf32>
    %75 = vector.extract_strided_slice %74 {offsets = [0, 0], sizes = [8, 32], strides = [1, 1]} : vector<8x128xf32> to vector<8x32xf32>
    %76 = arith.negf %75 : vector<8x32xf32>
    %77 = math.exp %76 : vector<8x32xf32>
    %cst_27 = arith.constant 1.000000e+00 : f32
    %78 = vector.broadcast %cst_27 : f32 to vector<8x32xf32>
    %79 = arith.addf %78, %77 : vector<8x32xf32>
    %80 = arith.divf %78, %79 : vector<8x32xf32>
    %81 = vector.extract_strided_slice %74 {offsets = [0, 32], sizes = [8, 32], strides = [1, 1]} : vector<8x128xf32> to vector<8x32xf32>
    %82 = arith.negf %81 : vector<8x32xf32>
    %83 = math.exp %82 : vector<8x32xf32>
    %cst_28 = arith.constant 1.000000e+00 : f32
    %84 = vector.broadcast %cst_28 : f32 to vector<8x32xf32>
    %85 = arith.addf %84, %83 : vector<8x32xf32>
    %86 = arith.divf %84, %85 : vector<8x32xf32>
    %87 = vector.extract_strided_slice %74 {offsets = [0, 64], sizes = [8, 32], strides = [1, 1]} : vector<8x128xf32> to vector<8x32xf32>
    %88 = math.tanh %87 : vector<8x32xf32>
    %89 = vector.extract_strided_slice %74 {offsets = [0, 96], sizes = [8, 32], strides = [1, 1]} : vector<8x128xf32> to vector<8x32xf32>
    %90 = arith.negf %89 : vector<8x32xf32>
    %91 = math.exp %90 : vector<8x32xf32>
    %cst_29 = arith.constant 1.000000e+00 : f32
    %92 = vector.broadcast %cst_29 : f32 to vector<8x32xf32>
    %93 = arith.addf %92, %91 : vector<8x32xf32>
    %94 = arith.divf %92, %93 : vector<8x32xf32>
    %95 = arith.mulf %86, %71 : vector<8x32xf32>
    %96 = arith.mulf %80, %88 : vector<8x32xf32>
    %97 = arith.addf %95, %96 : vector<8x32xf32>
    %98 = math.tanh %97 : vector<8x32xf32>
    %99 = arith.mulf %94, %98 : vector<8x32xf32>
    %100 = vector.extract_strided_slice %99 {offsets = [0, 0], sizes = [8, 16], strides = [1, 1]} : vector<8x32xf32> to vector<8x16xf32>
    %101 = vector.extract_strided_slice %99 {offsets = [0, 16], sizes = [8, 16], strides = [1, 1]} : vector<8x32xf32> to vector<8x16xf32>
    %102 = arith.truncf %99 : vector<8x32xf32> to vector<8x32xbf16>
    %cst_30 = arith.constant dense<0.000000e+00> : vector<8x128xf32>
    %103 = tpu.matmul %102, %2, %cst_30 {dimension_numbers = #tpu.dot_dimension_numbers<[1], [0], [0], [1], [0, 0, 1, 1], [], []>} : vector<8x32xbf16>, vector<32x128xbf16>, vector<8x128xf32> -> vector<8x128xf32>
    %104 = arith.addf %63, %103 : vector<8x128xf32>
    %105 = vector.extract_strided_slice %104 {offsets = [0, 0], sizes = [8, 32], strides = [1, 1]} : vector<8x128xf32> to vector<8x32xf32>
    %106 = arith.negf %105 : vector<8x32xf32>
    %107 = math.exp %106 : vector<8x32xf32>
    %cst_31 = arith.constant 1.000000e+00 : f32
    %108 = vector.broadcast %cst_31 : f32 to vector<8x32xf32>
    %109 = arith.addf %108, %107 : vector<8x32xf32>
    %110 = arith.divf %108, %109 : vector<8x32xf32>
    %111 = vector.extract_strided_slice %104 {offsets = [0, 32], sizes = [8, 32], strides = [1, 1]} : vector<8x128xf32> to vector<8x32xf32>
    %112 = arith.negf %111 : vector<8x32xf32>
    %113 = math.exp %112 : vector<8x32xf32>
    %cst_32 = arith.constant 1.000000e+00 : f32
    %114 = vector.broadcast %cst_32 : f32 to vector<8x32xf32>
    %115 = arith.addf %114, %113 : vector<8x32xf32>
    %116 = arith.divf %114, %115 : vector<8x32xf32>
    %117 = vector.extract_strided_slice %104 {offsets = [0, 64], sizes = [8, 32], strides = [1, 1]} : vector<8x128xf32> to vector<8x32xf32>
    %118 = math.tanh %117 : vector<8x32xf32>
    %119 = vector.extract_strided_slice %104 {offsets = [0, 96], sizes = [8, 32], strides = [1, 1]} : vector<8x128xf32> to vector<8x32xf32>
    %120 = arith.negf %119 : vector<8x32xf32>
    %121 = math.exp %120 : vector<8x32xf32>
    %cst_33 = arith.constant 1.000000e+00 : f32
    %122 = vector.broadcast %cst_33 : f32 to vector<8x32xf32>
    %123 = arith.addf %122, %121 : vector<8x32xf32>
    %124 = arith.divf %122, %123 : vector<8x32xf32>
    %125 = arith.mulf %116, %97 : vector<8x32xf32>
    %126 = arith.mulf %110, %118 : vector<8x32xf32>
    %127 = arith.addf %125, %126 : vector<8x32xf32>
    %128 = math.tanh %127 : vector<8x32xf32>
    %129 = arith.mulf %124, %128 : vector<8x32xf32>
    %130 = vector.extract_strided_slice %129 {offsets = [0, 0], sizes = [8, 16], strides = [1, 1]} : vector<8x32xf32> to vector<8x16xf32>
    %131 = vector.extract_strided_slice %129 {offsets = [0, 16], sizes = [8, 16], strides = [1, 1]} : vector<8x32xf32> to vector<8x16xf32>
    %132 = arith.truncf %129 : vector<8x32xf32> to vector<8x32xbf16>
    %cst_34 = arith.constant dense<0.000000e+00> : vector<8x128xf32>
    %133 = tpu.matmul %132, %2, %cst_34 {dimension_numbers = #tpu.dot_dimension_numbers<[1], [0], [0], [1], [0, 0, 1, 1], [], []>} : vector<8x32xbf16>, vector<32x128xbf16>, vector<8x128xf32> -> vector<8x128xf32>
    %134 = arith.addf %64, %133 : vector<8x128xf32>
    %135 = vector.extract_strided_slice %134 {offsets = [0, 0], sizes = [8, 32], strides = [1, 1]} : vector<8x128xf32> to vector<8x32xf32>
    %136 = arith.negf %135 : vector<8x32xf32>
    %137 = math.exp %136 : vector<8x32xf32>
    %cst_35 = arith.constant 1.000000e+00 : f32
    %138 = vector.broadcast %cst_35 : f32 to vector<8x32xf32>
    %139 = arith.addf %138, %137 : vector<8x32xf32>
    %140 = arith.divf %138, %139 : vector<8x32xf32>
    %141 = vector.extract_strided_slice %134 {offsets = [0, 32], sizes = [8, 32], strides = [1, 1]} : vector<8x128xf32> to vector<8x32xf32>
    %142 = arith.negf %141 : vector<8x32xf32>
    %143 = math.exp %142 : vector<8x32xf32>
    %cst_36 = arith.constant 1.000000e+00 : f32
    %144 = vector.broadcast %cst_36 : f32 to vector<8x32xf32>
    %145 = arith.addf %144, %143 : vector<8x32xf32>
    %146 = arith.divf %144, %145 : vector<8x32xf32>
    %147 = vector.extract_strided_slice %134 {offsets = [0, 64], sizes = [8, 32], strides = [1, 1]} : vector<8x128xf32> to vector<8x32xf32>
    %148 = math.tanh %147 : vector<8x32xf32>
    %149 = vector.extract_strided_slice %134 {offsets = [0, 96], sizes = [8, 32], strides = [1, 1]} : vector<8x128xf32> to vector<8x32xf32>
    %150 = arith.negf %149 : vector<8x32xf32>
    %151 = math.exp %150 : vector<8x32xf32>
    %cst_37 = arith.constant 1.000000e+00 : f32
    %152 = vector.broadcast %cst_37 : f32 to vector<8x32xf32>
    %153 = arith.addf %152, %151 : vector<8x32xf32>
    %154 = arith.divf %152, %153 : vector<8x32xf32>
    %155 = arith.mulf %146, %127 : vector<8x32xf32>
    %156 = arith.mulf %140, %148 : vector<8x32xf32>
    %157 = arith.addf %155, %156 : vector<8x32xf32>
    %158 = math.tanh %157 : vector<8x32xf32>
    %159 = arith.mulf %154, %158 : vector<8x32xf32>
    %160 = vector.extract_strided_slice %159 {offsets = [0, 0], sizes = [8, 16], strides = [1, 1]} : vector<8x32xf32> to vector<8x16xf32>
    %161 = vector.extract_strided_slice %159 {offsets = [0, 16], sizes = [8, 16], strides = [1, 1]} : vector<8x32xf32> to vector<8x16xf32>
    %162 = arith.truncf %159 : vector<8x32xf32> to vector<8x32xbf16>
    %cst_38 = arith.constant dense<0.000000e+00> : vector<8x128xf32>
    %163 = tpu.matmul %162, %2, %cst_38 {dimension_numbers = #tpu.dot_dimension_numbers<[1], [0], [0], [1], [0, 0, 1, 1], [], []>} : vector<8x32xbf16>, vector<32x128xbf16>, vector<8x128xf32> -> vector<8x128xf32>
    %164 = arith.addf %65, %163 : vector<8x128xf32>
    %165 = vector.extract_strided_slice %164 {offsets = [0, 0], sizes = [8, 32], strides = [1, 1]} : vector<8x128xf32> to vector<8x32xf32>
    %166 = arith.negf %165 : vector<8x32xf32>
    %167 = math.exp %166 : vector<8x32xf32>
    %cst_39 = arith.constant 1.000000e+00 : f32
    %168 = vector.broadcast %cst_39 : f32 to vector<8x32xf32>
    %169 = arith.addf %168, %167 : vector<8x32xf32>
    %170 = arith.divf %168, %169 : vector<8x32xf32>
    %171 = vector.extract_strided_slice %164 {offsets = [0, 32], sizes = [8, 32], strides = [1, 1]} : vector<8x128xf32> to vector<8x32xf32>
    %172 = arith.negf %171 : vector<8x32xf32>
    %173 = math.exp %172 : vector<8x32xf32>
    %cst_40 = arith.constant 1.000000e+00 : f32
    %174 = vector.broadcast %cst_40 : f32 to vector<8x32xf32>
    %175 = arith.addf %174, %173 : vector<8x32xf32>
    %176 = arith.divf %174, %175 : vector<8x32xf32>
    %177 = vector.extract_strided_slice %164 {offsets = [0, 64], sizes = [8, 32], strides = [1, 1]} : vector<8x128xf32> to vector<8x32xf32>
    %178 = math.tanh %177 : vector<8x32xf32>
    %179 = vector.extract_strided_slice %164 {offsets = [0, 96], sizes = [8, 32], strides = [1, 1]} : vector<8x128xf32> to vector<8x32xf32>
    %180 = arith.negf %179 : vector<8x32xf32>
    %181 = math.exp %180 : vector<8x32xf32>
    %cst_41 = arith.constant 1.000000e+00 : f32
    %182 = vector.broadcast %cst_41 : f32 to vector<8x32xf32>
    %183 = arith.addf %182, %181 : vector<8x32xf32>
    %184 = arith.divf %182, %183 : vector<8x32xf32>
    %185 = arith.mulf %176, %157 : vector<8x32xf32>
    %186 = arith.mulf %170, %178 : vector<8x32xf32>
    %187 = arith.addf %185, %186 : vector<8x32xf32>
    %188 = math.tanh %187 : vector<8x32xf32>
    %189 = arith.mulf %184, %188 : vector<8x32xf32>
    %190 = vector.extract_strided_slice %189 {offsets = [0, 0], sizes = [8, 16], strides = [1, 1]} : vector<8x32xf32> to vector<8x16xf32>
    %191 = vector.extract_strided_slice %189 {offsets = [0, 16], sizes = [8, 16], strides = [1, 1]} : vector<8x32xf32> to vector<8x16xf32>
    %192 = arith.truncf %189 : vector<8x32xf32> to vector<8x32xbf16>
    %cst_42 = arith.constant dense<0.000000e+00> : vector<8x128xf32>
    %193 = tpu.matmul %192, %2, %cst_42 {dimension_numbers = #tpu.dot_dimension_numbers<[1], [0], [0], [1], [0, 0, 1, 1], [], []>} : vector<8x32xbf16>, vector<32x128xbf16>, vector<8x128xf32> -> vector<8x128xf32>
    %194 = arith.addf %66, %193 : vector<8x128xf32>
    %195 = vector.extract_strided_slice %194 {offsets = [0, 0], sizes = [8, 32], strides = [1, 1]} : vector<8x128xf32> to vector<8x32xf32>
    %196 = arith.negf %195 : vector<8x32xf32>
    %197 = math.exp %196 : vector<8x32xf32>
    %cst_43 = arith.constant 1.000000e+00 : f32
    %198 = vector.broadcast %cst_43 : f32 to vector<8x32xf32>
    %199 = arith.addf %198, %197 : vector<8x32xf32>
    %200 = arith.divf %198, %199 : vector<8x32xf32>
    %201 = vector.extract_strided_slice %194 {offsets = [0, 32], sizes = [8, 32], strides = [1, 1]} : vector<8x128xf32> to vector<8x32xf32>
    %202 = arith.negf %201 : vector<8x32xf32>
    %203 = math.exp %202 : vector<8x32xf32>
    %cst_44 = arith.constant 1.000000e+00 : f32
    %204 = vector.broadcast %cst_44 : f32 to vector<8x32xf32>
    %205 = arith.addf %204, %203 : vector<8x32xf32>
    %206 = arith.divf %204, %205 : vector<8x32xf32>
    %207 = vector.extract_strided_slice %194 {offsets = [0, 64], sizes = [8, 32], strides = [1, 1]} : vector<8x128xf32> to vector<8x32xf32>
    %208 = math.tanh %207 : vector<8x32xf32>
    %209 = vector.extract_strided_slice %194 {offsets = [0, 96], sizes = [8, 32], strides = [1, 1]} : vector<8x128xf32> to vector<8x32xf32>
    %210 = arith.negf %209 : vector<8x32xf32>
    %211 = math.exp %210 : vector<8x32xf32>
    %cst_45 = arith.constant 1.000000e+00 : f32
    %212 = vector.broadcast %cst_45 : f32 to vector<8x32xf32>
    %213 = arith.addf %212, %211 : vector<8x32xf32>
    %214 = arith.divf %212, %213 : vector<8x32xf32>
    %215 = arith.mulf %206, %187 : vector<8x32xf32>
    %216 = arith.mulf %200, %208 : vector<8x32xf32>
    %217 = arith.addf %215, %216 : vector<8x32xf32>
    %218 = math.tanh %217 : vector<8x32xf32>
    %219 = arith.mulf %214, %218 : vector<8x32xf32>
    %220 = vector.extract_strided_slice %219 {offsets = [0, 0], sizes = [8, 16], strides = [1, 1]} : vector<8x32xf32> to vector<8x16xf32>
    %221 = vector.extract_strided_slice %219 {offsets = [0, 16], sizes = [8, 16], strides = [1, 1]} : vector<8x32xf32> to vector<8x16xf32>
    %222 = arith.truncf %219 : vector<8x32xf32> to vector<8x32xbf16>
    %cst_46 = arith.constant dense<0.000000e+00> : vector<8x128xf32>
    %223 = tpu.matmul %222, %2, %cst_46 {dimension_numbers = #tpu.dot_dimension_numbers<[1], [0], [0], [1], [0, 0, 1, 1], [], []>} : vector<8x32xbf16>, vector<32x128xbf16>, vector<8x128xf32> -> vector<8x128xf32>
    %224 = arith.addf %67, %223 : vector<8x128xf32>
    %225 = vector.extract_strided_slice %224 {offsets = [0, 0], sizes = [8, 32], strides = [1, 1]} : vector<8x128xf32> to vector<8x32xf32>
    %226 = arith.negf %225 : vector<8x32xf32>
    %227 = math.exp %226 : vector<8x32xf32>
    %cst_47 = arith.constant 1.000000e+00 : f32
    %228 = vector.broadcast %cst_47 : f32 to vector<8x32xf32>
    %229 = arith.addf %228, %227 : vector<8x32xf32>
    %230 = arith.divf %228, %229 : vector<8x32xf32>
    %231 = vector.extract_strided_slice %224 {offsets = [0, 32], sizes = [8, 32], strides = [1, 1]} : vector<8x128xf32> to vector<8x32xf32>
    %232 = arith.negf %231 : vector<8x32xf32>
    %233 = math.exp %232 : vector<8x32xf32>
    %cst_48 = arith.constant 1.000000e+00 : f32
    %234 = vector.broadcast %cst_48 : f32 to vector<8x32xf32>
    %235 = arith.addf %234, %233 : vector<8x32xf32>
    %236 = arith.divf %234, %235 : vector<8x32xf32>
    %237 = vector.extract_strided_slice %224 {offsets = [0, 64], sizes = [8, 32], strides = [1, 1]} : vector<8x128xf32> to vector<8x32xf32>
    %238 = math.tanh %237 : vector<8x32xf32>
    %239 = vector.extract_strided_slice %224 {offsets = [0, 96], sizes = [8, 32], strides = [1, 1]} : vector<8x128xf32> to vector<8x32xf32>
    %240 = arith.negf %239 : vector<8x32xf32>
    %241 = math.exp %240 : vector<8x32xf32>
    %cst_49 = arith.constant 1.000000e+00 : f32
    %242 = vector.broadcast %cst_49 : f32 to vector<8x32xf32>
    %243 = arith.addf %242, %241 : vector<8x32xf32>
    %244 = arith.divf %242, %243 : vector<8x32xf32>
    %245 = arith.mulf %236, %217 : vector<8x32xf32>
    %246 = arith.mulf %230, %238 : vector<8x32xf32>
    %247 = arith.addf %245, %246 : vector<8x32xf32>
    %248 = math.tanh %247 : vector<8x32xf32>
    %249 = arith.mulf %244, %248 : vector<8x32xf32>
    %250 = vector.extract_strided_slice %249 {offsets = [0, 0], sizes = [8, 16], strides = [1, 1]} : vector<8x32xf32> to vector<8x16xf32>
    %251 = vector.extract_strided_slice %249 {offsets = [0, 16], sizes = [8, 16], strides = [1, 1]} : vector<8x32xf32> to vector<8x16xf32>
    %252 = arith.truncf %249 : vector<8x32xf32> to vector<8x32xbf16>
    %cst_50 = arith.constant dense<0.000000e+00> : vector<8x128xf32>
    %253 = tpu.matmul %252, %2, %cst_50 {dimension_numbers = #tpu.dot_dimension_numbers<[1], [0], [0], [1], [0, 0, 1, 1], [], []>} : vector<8x32xbf16>, vector<32x128xbf16>, vector<8x128xf32> -> vector<8x128xf32>
    %254 = arith.addf %68, %253 : vector<8x128xf32>
    %255 = vector.extract_strided_slice %254 {offsets = [0, 0], sizes = [8, 32], strides = [1, 1]} : vector<8x128xf32> to vector<8x32xf32>
    %256 = arith.negf %255 : vector<8x32xf32>
    %257 = math.exp %256 : vector<8x32xf32>
    %cst_51 = arith.constant 1.000000e+00 : f32
    %258 = vector.broadcast %cst_51 : f32 to vector<8x32xf32>
    %259 = arith.addf %258, %257 : vector<8x32xf32>
    %260 = arith.divf %258, %259 : vector<8x32xf32>
    %261 = vector.extract_strided_slice %254 {offsets = [0, 32], sizes = [8, 32], strides = [1, 1]} : vector<8x128xf32> to vector<8x32xf32>
    %262 = arith.negf %261 : vector<8x32xf32>
    %263 = math.exp %262 : vector<8x32xf32>
    %cst_52 = arith.constant 1.000000e+00 : f32
    %264 = vector.broadcast %cst_52 : f32 to vector<8x32xf32>
    %265 = arith.addf %264, %263 : vector<8x32xf32>
    %266 = arith.divf %264, %265 : vector<8x32xf32>
    %267 = vector.extract_strided_slice %254 {offsets = [0, 64], sizes = [8, 32], strides = [1, 1]} : vector<8x128xf32> to vector<8x32xf32>
    %268 = math.tanh %267 : vector<8x32xf32>
    %269 = vector.extract_strided_slice %254 {offsets = [0, 96], sizes = [8, 32], strides = [1, 1]} : vector<8x128xf32> to vector<8x32xf32>
    %270 = arith.negf %269 : vector<8x32xf32>
    %271 = math.exp %270 : vector<8x32xf32>
    %cst_53 = arith.constant 1.000000e+00 : f32
    %272 = vector.broadcast %cst_53 : f32 to vector<8x32xf32>
    %273 = arith.addf %272, %271 : vector<8x32xf32>
    %274 = arith.divf %272, %273 : vector<8x32xf32>
    %275 = arith.mulf %266, %247 : vector<8x32xf32>
    %276 = arith.mulf %260, %268 : vector<8x32xf32>
    %277 = arith.addf %275, %276 : vector<8x32xf32>
    %278 = math.tanh %277 : vector<8x32xf32>
    %279 = arith.mulf %274, %278 : vector<8x32xf32>
    %280 = vector.extract_strided_slice %279 {offsets = [0, 0], sizes = [8, 16], strides = [1, 1]} : vector<8x32xf32> to vector<8x16xf32>
    %281 = vector.extract_strided_slice %279 {offsets = [0, 16], sizes = [8, 16], strides = [1, 1]} : vector<8x32xf32> to vector<8x16xf32>
    %282 = arith.truncf %279 : vector<8x32xf32> to vector<8x32xbf16>
    %cst_54 = arith.constant dense<0.000000e+00> : vector<8x128xf32>
    %283 = tpu.matmul %282, %2, %cst_54 {dimension_numbers = #tpu.dot_dimension_numbers<[1], [0], [0], [1], [0, 0, 1, 1], [], []>} : vector<8x32xbf16>, vector<32x128xbf16>, vector<8x128xf32> -> vector<8x128xf32>
    %284 = arith.addf %69, %283 : vector<8x128xf32>
    %285 = vector.extract_strided_slice %284 {offsets = [0, 0], sizes = [8, 32], strides = [1, 1]} : vector<8x128xf32> to vector<8x32xf32>
    %286 = arith.negf %285 : vector<8x32xf32>
    %287 = math.exp %286 : vector<8x32xf32>
    %cst_55 = arith.constant 1.000000e+00 : f32
    %288 = vector.broadcast %cst_55 : f32 to vector<8x32xf32>
    %289 = arith.addf %288, %287 : vector<8x32xf32>
    %290 = arith.divf %288, %289 : vector<8x32xf32>
    %291 = vector.extract_strided_slice %284 {offsets = [0, 32], sizes = [8, 32], strides = [1, 1]} : vector<8x128xf32> to vector<8x32xf32>
    %292 = arith.negf %291 : vector<8x32xf32>
    %293 = math.exp %292 : vector<8x32xf32>
    %cst_56 = arith.constant 1.000000e+00 : f32
    %294 = vector.broadcast %cst_56 : f32 to vector<8x32xf32>
    %295 = arith.addf %294, %293 : vector<8x32xf32>
    %296 = arith.divf %294, %295 : vector<8x32xf32>
    %297 = vector.extract_strided_slice %284 {offsets = [0, 64], sizes = [8, 32], strides = [1, 1]} : vector<8x128xf32> to vector<8x32xf32>
    %298 = math.tanh %297 : vector<8x32xf32>
    %299 = vector.extract_strided_slice %284 {offsets = [0, 96], sizes = [8, 32], strides = [1, 1]} : vector<8x128xf32> to vector<8x32xf32>
    %300 = arith.negf %299 : vector<8x32xf32>
    %301 = math.exp %300 : vector<8x32xf32>
    %cst_57 = arith.constant 1.000000e+00 : f32
    %302 = vector.broadcast %cst_57 : f32 to vector<8x32xf32>
    %303 = arith.addf %302, %301 : vector<8x32xf32>
    %304 = arith.divf %302, %303 : vector<8x32xf32>
    %305 = arith.mulf %296, %277 : vector<8x32xf32>
    %306 = arith.mulf %290, %298 : vector<8x32xf32>
    %307 = arith.addf %305, %306 : vector<8x32xf32>
    %308 = math.tanh %307 : vector<8x32xf32>
    %309 = arith.mulf %304, %308 : vector<8x32xf32>
    %310 = vector.extract_strided_slice %309 {offsets = [0, 0], sizes = [8, 16], strides = [1, 1]} : vector<8x32xf32> to vector<8x16xf32>
    %311 = vector.extract_strided_slice %309 {offsets = [0, 16], sizes = [8, 16], strides = [1, 1]} : vector<8x32xf32> to vector<8x16xf32>
    %312 = tpu.concatenate %100, %311 in 1 : vector<8x16xf32>, vector<8x16xf32> -> vector<8x32xf32>
    %313 = tpu.concatenate %130, %281 in 1 : vector<8x16xf32>, vector<8x16xf32> -> vector<8x32xf32>
    %314 = tpu.concatenate %160, %251 in 1 : vector<8x16xf32>, vector<8x16xf32> -> vector<8x32xf32>
    %315 = tpu.concatenate %190, %221 in 1 : vector<8x16xf32>, vector<8x16xf32> -> vector<8x32xf32>
    %316 = tpu.concatenate %220, %191 in 1 : vector<8x16xf32>, vector<8x16xf32> -> vector<8x32xf32>
    %317 = tpu.concatenate %250, %161 in 1 : vector<8x16xf32>, vector<8x16xf32> -> vector<8x32xf32>
    %318 = tpu.concatenate %280, %131 in 1 : vector<8x16xf32>, vector<8x16xf32> -> vector<8x32xf32>
    %319 = tpu.concatenate %310, %101 in 1 : vector<8x16xf32>, vector<8x16xf32> -> vector<8x32xf32>
    %320 = tpu.concatenate %312, %313, %314, %315, %316, %317, %318, %319 in 1 : vector<8x32xf32>, vector<8x32xf32>, vector<8x32xf32>, vector<8x32xf32>, vector<8x32xf32>, vector<8x32xf32>, vector<8x32xf32>, vector<8x32xf32> -> vector<8x256xf32>
    %c0_58 = arith.constant 0 : index
    %c0_59 = arith.constant 0 : index
    %321 = vector.load %arg11[%c0_58, %c0_59] : memref<8x256xf32, #tpu.memory_space<vmem>>, vector<8x256xf32>
    tpu.vector_store %arg11[%c0_58, %c0_59], %320 {strides = array<i32>} : memref<8x256xf32, #tpu.memory_space<vmem>>, vector<8x256xf32>,
    %322 = arith.truncf %320 : vector<8x256xf32> to vector<8x256xbf16>
    %c0_60 = arith.constant 0 : index
    %c0_61 = arith.constant 0 : index
    %323 = vector.load %arg6[%c0_60, %c0_61] : memref<256x256xbf16, #tpu.memory_space<vmem>>, vector<256x256xbf16>
    %cst_62 = arith.constant dense<0.000000e+00> : vector<8x256xf32>
    %324 = tpu.matmul %322, %323, %cst_62 {dimension_numbers = #tpu.dot_dimension_numbers<[1], [0], [0], [1], [0, 0, 1, 1], [], []>} : vector<8x256xbf16>, vector<256x256xbf16>, vector<8x256xf32> -> vector<8x256xf32>
    %c0_63 = arith.constant 0 : index
    %c0_64 = arith.constant 0 : index
    %325 = vector.load %arg7[%c0_63, %c0_64] : memref<1x256xf32, #tpu.memory_space<vmem>>, vector<1x256xf32>
    %326 = vector.broadcast %325 : vector<1x256xf32> to vector<8x256xf32>
    %327 = arith.addf %324, %326 : vector<8x256xf32>
    %328 = math.tanh %327 : vector<8x256xf32>
    %c0_65 = arith.constant 0 : index
    %c0_66 = arith.constant 0 : index
    %329 = vector.load %arg8[%c0_65, %c0_66] : memref<256x8xf32, #tpu.memory_space<vmem>>, vector<256x8xf32>
    %cst_67 = arith.constant dense<0.000000e+00> : vector<8x8xf32>
    %330 = tpu.matmul %328, %329, %cst_67 {dimension_numbers = #tpu.dot_dimension_numbers<[1], [0], [0], [1], [0, 0, 1, 1], [], []>} : vector<8x256xf32>, vector<256x8xf32>, vector<8x8xf32> -> vector<8x8xf32>
    %c0_68 = arith.constant 0 : index
    %c0_69 = arith.constant 0 : index
    %331 = vector.load %arg9[%c0_68, %c0_69] : memref<1x1xf32, #tpu.memory_space<vmem>>, vector<1x1xf32>
    %332 = vector.broadcast %331 : vector<1x1xf32> to vector<8x8xf32>
    %333 = arith.addf %330, %332 : vector<8x8xf32>
    %c0_70 = arith.constant 0 : index
    %c0_71 = arith.constant 0 : index
    %334 = vector.load %arg2[%c0_70, %c0_71] : memref<8x8xi32, #tpu.memory_space<vmem>>, vector<8x8xi32>
    %c0_i32_72 = arith.constant 0 : i32
    %335 = vector.broadcast %c0_i32_72 : i32 to vector<8x8xi32>
    %336 = arith.cmpi eq, %334, %335 : vector<8x8xi32>
    %cst_73 = arith.constant -1.000000e+09 : f32
    %337 = vector.broadcast %cst_73 : f32 to vector<8x8xf32>
    %338 = arith.select %336, %337, %333 : vector<8x8xi1>, vector<8x8xf32>
    %cst_74 = arith.constant dense<0xFF800000> : vector<8xf32>
    %339 = vector.multi_reduction <maximumf>, %338, %cst_74 [1] : vector<8x8xf32> to vector<8xf32>
    %340 = vector.shape_cast %339 : vector<8xf32> to vector<8x1xf32>
    %341 = vector.broadcast %340 : vector<8x1xf32> to vector<8x8xf32>
    %342 = arith.subf %338, %341 : vector<8x8xf32>
    %343 = math.exp %342 : vector<8x8xf32>
    %cst_75 = arith.constant dense<0.000000e+00> : vector<8xf32>
    %344 = vector.multi_reduction <add>, %343, %cst_75 [1] : vector<8x8xf32> to vector<8xf32>
    %345 = vector.shape_cast %344 : vector<8xf32> to vector<8x1xf32>
    %346 = tpu.reciprocal %345 {approx = true} : vector<8x1xf32> -> vector<8x1xf32>
    %347 = vector.broadcast %346 : vector<8x1xf32> to vector<8x8xf32>
    %348 = arith.mulf %343, %347 : vector<8x8xf32>
    %cst_76 = arith.constant 0.000000e+00 : f32
    %349 = vector.broadcast %cst_76 : f32 to vector<8x32xf32>
    %350 = vector.extract_strided_slice %348 {offsets = [0, 0], sizes = [8, 1], strides = [1, 1]} : vector<8x8xf32> to vector<8x1xf32>
    %351 = vector.broadcast %350 : vector<8x1xf32> to vector<8x32xf32>
    %352 = arith.mulf %351, %312 : vector<8x32xf32>
    %353 = arith.addf %349, %352 : vector<8x32xf32>
    %354 = vector.extract_strided_slice %348 {offsets = [0, 1], sizes = [8, 1], strides = [1, 1]} : vector<8x8xf32> to vector<8x1xf32>
    %355 = vector.broadcast %354 : vector<8x1xf32> to vector<8x32xf32>
    %356 = arith.mulf %355, %313 : vector<8x32xf32>
    %357 = arith.addf %353, %356 : vector<8x32xf32>
    %358 = vector.extract_strided_slice %348 {offsets = [0, 2], sizes = [8, 1], strides = [1, 1]} : vector<8x8xf32> to vector<8x1xf32>
    %359 = vector.broadcast %358 : vector<8x1xf32> to vector<8x32xf32>
    %360 = arith.mulf %359, %314 : vector<8x32xf32>
    %361 = arith.addf %357, %360 : vector<8x32xf32>
    %362 = vector.extract_strided_slice %348 {offsets = [0, 3], sizes = [8, 1], strides = [1, 1]} : vector<8x8xf32> to vector<8x1xf32>
    %363 = vector.broadcast %362 : vector<8x1xf32> to vector<8x32xf32>
    %364 = arith.mulf %363, %315 : vector<8x32xf32>
    %365 = arith.addf %361, %364 : vector<8x32xf32>
    %366 = vector.extract_strided_slice %348 {offsets = [0, 4], sizes = [8, 1], strides = [1, 1]} : vector<8x8xf32> to vector<8x1xf32>
    %367 = vector.broadcast %366 : vector<8x1xf32> to vector<8x32xf32>
    %368 = arith.mulf %367, %316 : vector<8x32xf32>
    %369 = arith.addf %365, %368 : vector<8x32xf32>
    %370 = vector.extract_strided_slice %348 {offsets = [0, 5], sizes = [8, 1], strides = [1, 1]} : vector<8x8xf32> to vector<8x1xf32>
    %371 = vector.broadcast %370 : vector<8x1xf32> to vector<8x32xf32>
    %372 = arith.mulf %371, %317 : vector<8x32xf32>
    %373 = arith.addf %369, %372 : vector<8x32xf32>
    %374 = vector.extract_strided_slice %348 {offsets = [0, 6], sizes = [8, 1], strides = [1, 1]} : vector<8x8xf32> to vector<8x1xf32>
    %375 = vector.broadcast %374 : vector<8x1xf32> to vector<8x32xf32>
    %376 = arith.mulf %375, %318 : vector<8x32xf32>
    %377 = arith.addf %373, %376 : vector<8x32xf32>
    %378 = vector.extract_strided_slice %348 {offsets = [0, 7], sizes = [8, 1], strides = [1, 1]} : vector<8x8xf32> to vector<8x1xf32>
    %379 = vector.broadcast %378 : vector<8x1xf32> to vector<8x32xf32>
    %380 = arith.mulf %379, %319 : vector<8x32xf32>
    %381 = arith.addf %377, %380 : vector<8x32xf32>
    %cst_77 = arith.constant 0.000000e+00 : f32
    %382 = vector.broadcast %cst_77 : f32 to vector<8x96xf32>
    %383 = tpu.concatenate %381, %382 in 1 : vector<8x32xf32>, vector<8x96xf32> -> vector<8x128xf32>
    %c0_78 = arith.constant 0 : index
    %c0_79 = arith.constant 0 : index
    %384 = vector.load %arg10[%c0_78, %c0_79] : memref<8x128xf32, #tpu.memory_space<vmem>>, vector<8x128xf32>
    tpu.vector_store %arg10[%c0_78, %c0_79], %383 {strides = array<i32>} : memref<8x128xf32, #tpu.memory_space<vmem>>, vector<8x128xf32>,
    return
  }
  func.func @transform_0(%arg0: i32) -> (i32, i32) {
    %c0_i32 = arith.constant 0 : i32
    %c0_i32_0 = arith.constant 0 : i32
    return %arg0, %c0_i32 : i32, i32
  }
  func.func @transform_1(%arg0: i32) -> (i32, i32) {
    %c0_i32 = arith.constant 0 : i32
    %c0_i32_0 = arith.constant 0 : i32
    return %arg0, %c0_i32 : i32, i32
  }
  func.func @transform_2(%arg0: i32) -> (i32, i32) {
    %c0_i32 = arith.constant 0 : i32
    %c0_i32_0 = arith.constant 0 : i32
    %c0_i32_1 = arith.constant 0 : i32
    return %c0_i32, %c0_i32_0 : i32, i32
  }
  func.func @transform_3(%arg0: i32) -> (i32, i32) {
    %c0_i32 = arith.constant 0 : i32
    %c0_i32_0 = arith.constant 0 : i32
    %c0_i32_1 = arith.constant 0 : i32
    return %c0_i32, %c0_i32_0 : i32, i32
  }
  func.func @transform_4(%arg0: i32) -> (i32, i32) {
    %c0_i32 = arith.constant 0 : i32
    %c0_i32_0 = arith.constant 0 : i32
    %c0_i32_1 = arith.constant 0 : i32
    return %c0_i32, %c0_i32_0 : i32, i32
  }
  func.func @transform_5(%arg0: i32) -> (i32, i32) {
    %c0_i32 = arith.constant 0 : i32
    %c0_i32_0 = arith.constant 0 : i32
    %c0_i32_1 = arith.constant 0 : i32
    return %c0_i32, %c0_i32_0 : i32, i32
  }
  func.func @transform_6(%arg0: i32) -> (i32, i32) {
    %c0_i32 = arith.constant 0 : i32
    %c0_i32_0 = arith.constant 0 : i32
    %c0_i32_1 = arith.constant 0 : i32
    return %c0_i32, %c0_i32_0 : i32, i32
  }
  func.func @transform_7(%arg0: i32) -> (i32, i32) {
    %c0_i32 = arith.constant 0 : i32
    %c0_i32_0 = arith.constant 0 : i32
    %c0_i32_1 = arith.constant 0 : i32
    return %c0_i32, %c0_i32_0 : i32, i32
  }
  func.func @transform_8(%arg0: i32) -> (i32, i32) {
    %c0_i32 = arith.constant 0 : i32
    %c0_i32_0 = arith.constant 0 : i32
    %c0_i32_1 = arith.constant 0 : i32
    return %c0_i32, %c0_i32_0 : i32, i32
  }
  func.func @transform_9(%arg0: i32) -> (i32, i32) {
    %c0_i32 = arith.constant 0 : i32
    %c0_i32_0 = arith.constant 0 : i32
    return %arg0, %c0_i32 : i32, i32
  }
  func.func @transform_10(%arg0: i32) -> (i32, i32) {
    %c0_i32 = arith.constant 0 : i32
    %c0_i32_0 = arith.constant 0 : i32
    return %arg0, %c0_i32 : i32, i32
  }
}

</mosaic_0001>

<llo_original>
// kernel: sent_level_rnn.1
$region0: #{sent_level_rnn.1}
  #allocation0 [shape = 'u32[]', space=smem, size = 0x4, offset = 0x4, fixed_abs, tag = 'smem constant byte address 0x4 - core index']
  #allocation1 [shape = 'u32[144,128]{1,0:T(1,128)}', space=vmem, size = 0x12000, scoped, tag = 'internal scratch']
  #allocation2 [shape = 'f32[1,1]{1,0:T(1,128)S(1)}', space=vmem, size = 0x200, scoped, tag = 'scoped memory for sent_level_rnn.1']
  %s0 = inlined_call_operand.vmem [shape: f32[16,256], index: 0, kind: input, shape index: {}]
  %s1 = inlined_call_operand.vmem [shape: s32[16,8], index: 1, kind: input, shape index: {}]
  %s2 = inlined_call_operand.vmem [shape: bf16[32,128], index: 2, kind: input, shape index: {}]
  %s3 = inlined_call_operand.vmem [shape: f32[1,128], index: 3, kind: input, shape index: {}]
  %s4 = inlined_call_operand.vmem [shape: bf16[32,128], index: 4, kind: input, shape index: {}]
  %s5 = inlined_call_operand.vmem [shape: bf16[256,256], index: 5, kind: input, shape index: {}]
  %s6 = inlined_call_operand.vmem [shape: f32[1,256], index: 6, kind: input, shape index: {}]
  %s7 = inlined_call_operand.vmem [shape: f32[256,8], index: 7, kind: input, shape index: {}]
  %s8 = inlined_call_operand.<no memory space> [shape: f32[1,1], index: 8, kind: input, shape index: {}]
  %s9 = inlined_call_operand.hbm [shape: f32[16,128], index: 9, kind: output, shape index: {0}]
  %s10 = inlined_call_operand.vmem [shape: f32[16,256], index: 10, kind: output, shape index: {1}]
  %11 = xla_tuple %s9, %s10
  %s12 = sld [smem:[#allocation0]]
  $region77: #{sent_level_rnn.1} parent=0
    _
  %s14 = ssub.s32 1, %s12
  %s15 = scalar_select 0, %s14, %s12
  %v16 = vstv %s8
  %17 = vst [vmem:[#allocation2] sm:$0x1] %v16
  $region1: #{sent_level_rnn.1} parent=0
    #allocation3 [shape = 'u8[8192]{0}', space=vmem, size = 0x2000, scoped, tag = 'output window, operand 0']
    #allocation4 [shape = 's32[2]{0}', space=sflag, size = 0x8, scoped, tag = 'scoped memory for sent_level_rnn.1']
    %18 = vsyncpa [#allocation4], 0
    %s19 = scalar_lea.sflag [#allocation4], 1
    %20 = vsyncpa %s19, 0
    loop: start=0, step=1, limit=4
    $region2: #{sent_level_rnn.1} parent=1 // loop_pre_header
      _
    $region3: #{sent_level_rnn.1} parent=1 // loop_header
      %s22 = sphi 0, %s26
      %p23 = scmp.ge.s32.totalorder %s22, 4
      %s32 = sphi 0, %s34
      %s35 = sphi 0, %s32
      %s36 = sphi 0, %s35
      %s52 = sphi 0, %s36
      %s58 = sphi 0, %s60
      %s61 = sphi 0, %s58
      %s62 = sphi 0, %s61
      %s78 = sphi 0, %s62
      %s82 = sphi 0, %s82
      %s84 = sphi 0, %s82
      %s85 = sphi 0, %s84
      %s99 = sphi 0, %s85
      %s103 = sphi 0, %s103
      %s105 = sphi 0, %s103
      %s106 = sphi 0, %s105
      %s120 = sphi 0, %s106
      %s124 = sphi 0, %s124
      %s126 = sphi 0, %s124
      %s127 = sphi 0, %s126
      %s141 = sphi 0, %s127
      %s145 = sphi 0, %s145
      %s147 = sphi 0, %s145
      %s148 = sphi 0, %s147
      %s162 = sphi 0, %s148
      %s166 = sphi 0, %s166
      %s168 = sphi 0, %s166
      %s169 = sphi 0, %s168
      %s183 = sphi 0, %s169
      %s187 = sphi 0, %s187
      %s189 = sphi 0, %s187
      %s190 = sphi 0, %s189
      %s204 = sphi 0, %s190
      %s208 = sphi 0, %s208
      %s210 = sphi 0, %s208
      %s211 = sphi 0, %s210
      %s225 = sphi 0, %s211
      %s231 = sphi 0, %s233
      %s234 = sphi 0, %s231
      %s235 = sphi 0, %s234
      %s251 = sphi 0, %s235
      %s257 = sphi 0, %s259
      %s260 = sphi 0, %s257
      %s261 = sphi 0, %s260
      %s277 = sphi 0, %s261
    $region4: #{sent_level_rnn.1} parent=1 // loop_header_branch
      %25 = sbr.rel (%p23) target = $region8
    $region5: #{sent_level_rnn.1} parent=1 // loop_body
      %s27 = ssub.s32 %s22, 1
      %s28 = ssub.s32 %s22, 2
      %s29 = sadd.s32 %s22, 1
      %s30 = ssub.s32 %s22, %s29
      %p31 = scmp.eq.s32.totalorder %s30, 0
      %s33 = sadd.s32 %s32, 1
      %s34 = scalar_select %p31, %s32, %s33
      %p37 = pneg %p31
      %p38 = scmp.eq.s32.totalorder %s22, 1
      %p39 = por %p37, %p38
      %p40 = scmp.ne.s32.totalorder %s32, %s35
      %p41 = scmp.eq.s32.totalorder %s22, 0
      %p42 = por %p40, %p41
      %p43 = scmp.ne.s32.totalorder %s32, %s35
      %p44 = scmp.eq.s32.totalorder %s27, 1
      %p45 = por %p43, %p44
      %p46 = scmp.ne.s32.totalorder %s35, %s36
      %p47 = scmp.eq.s32.totalorder %s27, 0
      %p48 = por %p46, %p47
      %p49 = scmp.ne.s32.totalorder %s35, %s36
      %p50 = scmp.eq.s32.totalorder %s28, 1
      %p51 = por %p49, %p50
      %p53 = scmp.ne.s32.totalorder %s36, %s52
      %p54 = scmp.eq.s32.totalorder %s28, 0
      %p55 = por %p53, %p54
      %s56 = ssub.s32 %s22, %s29
      %p57 = scmp.eq.s32.totalorder %s56, 0
      %s59 = sadd.s32 %s58, 1
      %s60 = scalar_select %p57, %s58, %s59
      %p63 = pneg %p57
      %p64 = scmp.eq.s32.totalorder %s22, 1
      %p65 = por %p63, %p64
      %p66 = scmp.ne.s32.totalorder %s58, %s61
      %p67 = scmp.eq.s32.totalorder %s22, 0
      %p68 = por %p66, %p67
      %p69 = scmp.ne.s32.totalorder %s58, %s61
      %p70 = scmp.eq.s32.totalorder %s27, 1
      %p71 = por %p69, %p70
      %p72 = scmp.ne.s32.totalorder %s61, %s62
      %p73 = scmp.eq.s32.totalorder %s27, 0
      %p74 = por %p72, %p73
      %p75 = scmp.ne.s32.totalorder %s61, %s62
      %p76 = scmp.eq.s32.totalorder %s28, 1
      %p77 = por %p75, %p76
      %p79 = scmp.ne.s32.totalorder %s62, %s78
      %p80 = scmp.eq.s32.totalorder %s28, 0
      %p81 = por %p79, %p80
      %s83 = sadd.s32 %s82, 1
      %p86 = scmp.eq.s32.totalorder %s22, 1
      %p87 = scmp.ne.s32.totalorder %s82, %s84
      %p88 = scmp.eq.s32.totalorder %s22, 0
      %p89 = por %p87, %p88
      %p90 = scmp.ne.s32.totalorder %s82, %s84
      %p91 = scmp.eq.s32.totalorder %s27, 1
      %p92 = por %p90, %p91
      %p93 = scmp.ne.s32.totalorder %s84, %s85
      %p94 = scmp.eq.s32.totalorder %s27, 0
      %p95 = por %p93, %p94
      %p96 = scmp.ne.s32.totalorder %s84, %s85
      %p97 = scmp.eq.s32.totalorder %s28, 1
      %p98 = por %p96, %p97
      %p100 = scmp.ne.s32.totalorder %s85, %s99
      %p101 = scmp.eq.s32.totalorder %s28, 0
      %p102 = por %p100, %p101
      %s104 = sadd.s32 %s103, 1
      %p107 = scmp.eq.s32.totalorder %s22, 1
      %p108 = scmp.ne.s32.totalorder %s103, %s105
      %p109 = scmp.eq.s32.totalorder %s22, 0
      %p110 = por %p108, %p109
      %p111 = scmp.ne.s32.totalorder %s103, %s105
      %p112 = scmp.eq.s32.totalorder %s27, 1
      %p113 = por %p111, %p112
      %p114 = scmp.ne.s32.totalorder %s105, %s106
      %p115 = scmp.eq.s32.totalorder %s27, 0
      %p116 = por %p114, %p115
      %p117 = scmp.ne.s32.totalorder %s105, %s106
      %p118 = scmp.eq.s32.totalorder %s28, 1
      %p119 = por %p117, %p118
      %p121 = scmp.ne.s32.totalorder %s106, %s120
      %p122 = scmp.eq.s32.totalorder %s28, 0
      %p123 = por %p121, %p122
      %s125 = sadd.s32 %s124, 1
      %p128 = scmp.eq.s32.totalorder %s22, 1
      %p129 = scmp.ne.s32.totalorder %s124, %s126
      %p130 = scmp.eq.s32.totalorder %s22, 0
      %p131 = por %p129, %p130
      %p132 = scmp.ne.s32.totalorder %s124, %s126
      %p133 = scmp.eq.s32.totalorder %s27, 1
      %p134 = por %p132, %p133
      %p135 = scmp.ne.s32.totalorder %s126, %s127
      %p136 = scmp.eq.s32.totalorder %s27, 0
      %p137 = por %p135, %p136
      %p138 = scmp.ne.s32.totalorder %s126, %s127
      %p139 = scmp.eq.s32.totalorder %s28, 1
      %p140 = por %p138, %p139
      %p142 = scmp.ne.s32.totalorder %s127, %s141
      %p143 = scmp.eq.s32.totalorder %s28, 0
      %p144 = por %p142, %p143
      %s146 = sadd.s32 %s145, 1
      %p149 = scmp.eq.s32.totalorder %s22, 1
      %p150 = scmp.ne.s32.totalorder %s145, %s147
      %p151 = scmp.eq.s32.totalorder %s22, 0
      %p152 = por %p150, %p151
      %p153 = scmp.ne.s32.totalorder %s145, %s147
      %p154 = scmp.eq.s32.totalorder %s27, 1
      %p155 = por %p153, %p154
      %p156 = scmp.ne.s32.totalorder %s147, %s148
      %p157 = scmp.eq.s32.totalorder %s27, 0
      %p158 = por %p156, %p157
      %p159 = scmp.ne.s32.totalorder %s147, %s148
      %p160 = scmp.eq.s32.totalorder %s28, 1
      %p161 = por %p159, %p160
      %p163 = scmp.ne.s32.totalorder %s148, %s162
      %p164 = scmp.eq.s32.totalorder %s28, 0
      %p165 = por %p163, %p164
      %s167 = sadd.s32 %s166, 1
      %p170 = scmp.eq.s32.totalorder %s22, 1
      %p171 = scmp.ne.s32.totalorder %s166, %s168
      %p172 = scmp.eq.s32.totalorder %s22, 0
      %p173 = por %p171, %p172
      %p174 = scmp.ne.s32.totalorder %s166, %s168
      %p175 = scmp.eq.s32.totalorder %s27, 1
      %p176 = por %p174, %p175
      %p177 = scmp.ne.s32.totalorder %s168, %s169
      %p178 = scmp.eq.s32.totalorder %s27, 0
      %p179 = por %p177, %p178
      %p180 = scmp.ne.s32.totalorder %s168, %s169
      %p181 = scmp.eq.s32.totalorder %s28, 1
      %p182 = por %p180, %p181
      %p184 = scmp.ne.s32.totalorder %s169, %s183
      %p185 = scmp.eq.s32.totalorder %s28, 0
      %p186 = por %p184, %p185
      %s188 = sadd.s32 %s187, 1
      %p191 = scmp.eq.s32.totalorder %s22, 1
      %p192 = scmp.ne.s32.totalorder %s187, %s189
      %p193 = scmp.eq.s32.totalorder %s22, 0
      %p194 = por %p192, %p193
      %p195 = scmp.ne.s32.totalorder %s187, %s189
      %p196 = scmp.eq.s32.totalorder %s27, 1
      %p197 = por %p195, %p196
      %p198 = scmp.ne.s32.totalorder %s189, %s190
      %p199 = scmp.eq.s32.totalorder %s27, 0
      %p200 = por %p198, %p199
      %p201 = scmp.ne.s32.totalorder %s189, %s190
      %p202 = scmp.eq.s32.totalorder %s28, 1
      %p203 = por %p201, %p202
      %p205 = scmp.ne.s32.totalorder %s190, %s204
      %p206 = scmp.eq.s32.totalorder %s28, 0
      %p207 = por %p205, %p206
      %s209 = sadd.s32 %s208, 1
      %p212 = scmp.eq.s32.totalorder %s22, 1
      %p213 = scmp.ne.s32.totalorder %s208, %s210
      %p214 = scmp.eq.s32.totalorder %s22, 0
      %p215 = por %p213, %p214
      %p216 = scmp.ne.s32.totalorder %s208, %s210
      %p217 = scmp.eq.s32.totalorder %s27, 1
      %p218 = por %p216, %p217
      %p219 = scmp.ne.s32.totalorder %s210, %s211
      %p220 = scmp.eq.s32.totalorder %s27, 0
      %p221 = por %p219, %p220
      %p222 = scmp.ne.s32.totalorder %s210, %s211
      %p223 = scmp.eq.s32.totalorder %s28, 1
      %p224 = por %p222, %p223
      %p226 = scmp.ne.s32.totalorder %s211, %s225
      %p227 = scmp.eq.s32.totalorder %s28, 0
      %p228 = por %p226, %p227
      %s229 = ssub.s32 %s22, %s29
      %p230 = scmp.eq.s32.totalorder %s229, 0
      %s232 = sadd.s32 %s231, 1
      %s233 = scalar_select %p230, %s231, %s232
      %p236 = pneg %p230
      %p237 = scmp.eq.s32.totalorder %s22, 1
      %p238 = por %p236, %p237
      %p239 = scmp.ne.s32.totalorder %s231, %s234
      %p240 = scmp.eq.s32.totalorder %s22, 0
      %p241 = por %p239, %p240
      %p242 = scmp.ne.s32.totalorder %s231, %s234
      %p243 = scmp.eq.s32.totalorder %s27, 1
      %p244 = por %p242, %p243
      %p245 = scmp.ne.s32.totalorder %s234, %s235
      %p246 = scmp.eq.s32.totalorder %s27, 0
      %p247 = por %p245, %p246
      %p248 = scmp.ne.s32.totalorder %s234, %s235
      %p249 = scmp.eq.s32.totalorder %s28, 1
      %p250 = por %p248, %p249
      %p252 = scmp.ne.s32.totalorder %s235, %s251
      %p253 = scmp.eq.s32.totalorder %s28, 0
      %p254 = por %p252, %p253
      %s255 = ssub.s32 %s22, %s29
      %p256 = scmp.eq.s32.totalorder %s255, 0
      %s258 = sadd.s32 %s257, 1
      %s259 = scalar_select %p256, %s257, %s258
      %p262 = pneg %p256
      %p263 = scmp.eq.s32.totalorder %s22, 1
      %p264 = por %p262, %p263
      %p265 = scmp.ne.s32.totalorder %s257, %s260
      %p266 = scmp.eq.s32.totalorder %s22, 0
      %p267 = por %p265, %p266
      %p268 = scmp.ne.s32.totalorder %s257, %s260
      %p269 = scmp.eq.s32.totalorder %s27, 1
      %p270 = por %p268, %p269
      %p271 = scmp.ne.s32.totalorder %s260, %s261
      %p272 = scmp.eq.s32.totalorder %s27, 0
      %p273 = por %p271, %p272
      %p274 = scmp.ne.s32.totalorder %s260, %s261
      %p275 = scmp.eq.s32.totalorder %s28, 1
      %p276 = por %p274, %p275
      %p278 = scmp.ne.s32.totalorder %s261, %s277
      %p279 = scmp.eq.s32.totalorder %s28, 0
      %p280 = por %p278, %p279
      %p281 = scmp.le.s32.totalorder 1, %s22
      %p282 = scmp.lt.s32.totalorder %s22, 3
      %p283 = pnand %p281, %p282
      %p284 = pneg %p283
      // Predicated region
      $region9: #{sent_level_rnn.1} parent=5 // pred_check
        _
      $region10: #{sent_level_rnn.1} parent=5 // pred_check_branch
        %286 = sbr.rel (%p283) target = $region12
      $region11: #{sent_level_rnn.1} parent=5 // pred_region
        %s287 = ssub.s32 %s22, 1
        // Predicated region
        $region13: #{sent_level_rnn.1} parent=11 // pred_check
          %p288 = pneg %p95
        $region14: #{sent_level_rnn.1} parent=11 // pred_check_branch
          %290 = sbr.rel (%p288) target = $region16
        $region15: #{sent_level_rnn.1} parent=11 // pred_region
          _
        $region16: #{sent_level_rnn.1} parent=11 // pred_fallthru
          _
        // Predicated region
        $region17: #{sent_level_rnn.1} parent=11 // pred_check
          %p291 = pneg %p116
        $region18: #{sent_level_rnn.1} parent=11 // pred_check_branch
          %293 = sbr.rel (%p291) target = $region20
        $region19: #{sent_level_rnn.1} parent=11 // pred_region
          _
        $region20: #{sent_level_rnn.1} parent=11 // pred_fallthru
          _
        // Predicated region
        $region21: #{sent_level_rnn.1} parent=11 // pred_check
          %p294 = pneg %p137
        $region22: #{sent_level_rnn.1} parent=11 // pred_check_branch
          %296 = sbr.rel (%p294) target = $region24
        $region23: #{sent_level_rnn.1} parent=11 // pred_region
          _
        $region24: #{sent_level_rnn.1} parent=11 // pred_fallthru
          _
        // Predicated region
        $region25: #{sent_level_rnn.1} parent=11 // pred_check
          %p297 = pneg %p158
        $region26: #{sent_level_rnn.1} parent=11 // pred_check_branch
          %299 = sbr.rel (%p297) target = $region28
        $region27: #{sent_level_rnn.1} parent=11 // pred_region
          _
        $region28: #{sent_level_rnn.1} parent=11 // pred_fallthru
          _
        // Predicated region
        $region29: #{sent_level_rnn.1} parent=11 // pred_check
          %p300 = pneg %p179
        $region30: #{sent_level_rnn.1} parent=11 // pred_check_branch
          %302 = sbr.rel (%p300) target = $region32
        $region31: #{sent_level_rnn.1} parent=11 // pred_region
          _
        $region32: #{sent_level_rnn.1} parent=11 // pred_fallthru
          _
        // Predicated region
        $region33: #{sent_level_rnn.1} parent=11 // pred_check
          %p303 = pneg %p200
        $region34: #{sent_level_rnn.1} parent=11 // pred_check_branch
          %305 = sbr.rel (%p303) target = $region36
        $region35: #{sent_level_rnn.1} parent=11 // pred_region
          _
        $region36: #{sent_level_rnn.1} parent=11 // pred_fallthru
          _
        // Predicated region
        $region37: #{sent_level_rnn.1} parent=11 // pred_check
          %p306 = pneg %p221
        $region38: #{sent_level_rnn.1} parent=11 // pred_check_branch
          %308 = sbr.rel (%p306) target = $region40
        $region39: #{sent_level_rnn.1} parent=11 // pred_region
          _
        $region40: #{sent_level_rnn.1} parent=11 // pred_fallthru
          _
      $region12: #{sent_level_rnn.1} parent=5 // pred_fallthru
        _
      %p309 = scmp.lt.s32.totalorder %s22, 2
      // Predicated region
      $region41: #{sent_level_rnn.1} parent=5 // pred_check
        %p310 = pneg %p309
      $region42: #{sent_level_rnn.1} parent=5 // pred_check_branch
        %312 = sbr.rel (%p310) target = $region44
      $region43: #{sent_level_rnn.1} parent=5 // pred_region
        // Predicated region
        $region45: #{sent_level_rnn.1} parent=43 // pred_check
          %p313 = pneg %p42
        $region46: #{sent_level_rnn.1} parent=43 // pred_check_branch
          %315 = sbr.rel (%p313) target = $region48
        $region47: #{sent_level_rnn.1} parent=43 // pred_region
          %p316 = scmp.lt.s32.totalorder %s22, 1
          %s317 = scalar_select %p316, %s22, 1
          %s318 = smul.addr %s317, 2
          %s319 = smul.addr %s318, 8
          %s320 = scalar_lea.vmem %s0, %s319
        $region48: #{sent_level_rnn.1} parent=43 // pred_fallthru
          _
        // Predicated region
        $region49: #{sent_level_rnn.1} parent=43 // pred_check
          %p321 = pneg %p68
        $region50: #{sent_level_rnn.1} parent=43 // pred_check_branch
          %323 = sbr.rel (%p321) target = $region52
        $region51: #{sent_level_rnn.1} parent=43 // pred_region
          %p324 = scmp.lt.s32.totalorder %s22, 1
          %s325 = scalar_select %p324, %s22, 1
          %s326 = smul.addr %s325, 8
          %s327 = scalar_lea.vmem %s1, %s326
        $region52: #{sent_level_rnn.1} parent=43 // pred_fallthru
          _
      $region44: #{sent_level_rnn.1} parent=5 // pred_fallthru
        _
      %p328 = scmp.le.s32.totalorder 1, %s22
      %p329 = scmp.lt.s32.totalorder %s22, 3
      %p330 = pnand %p328, %p329
      %p331 = pneg %p330
      // Predicated region
      $region53: #{sent_level_rnn.1} parent=5 // pred_check
        _
      $region54: #{sent_level_rnn.1} parent=5 // pred_check_branch
        %333 = sbr.rel (%p330) target = $region56
      $region55: #{sent_level_rnn.1} parent=5 // pred_region
        %s334 = ssub.s32 %s22, 1
        %p335 = scmp.lt.s32.totalorder %s27, 1
        %s336 = scalar_select %p335, %s27, 1
        %s337 = smul.addr %s336, 2
        %s338 = smul.addr %s337, 8
        %s339 = scalar_lea.vmem %s0, %s338
        %p340 = pneg %p48
        %p341 = pneg %p45
        %p342 = scmp.lt.s32.totalorder %s27, 1
        %s343 = scalar_select %p342, %s27, 1
        %s344 = smul.addr %s343, 8
        %s345 = scalar_lea.vmem %s1, %s344
        %p346 = pneg %p74
        %p347 = pneg %p71
        %p348 = pneg %p95
        %p349 = pneg %p92
        %p350 = pneg %p116
        %p351 = pneg %p113
        %p352 = pneg %p137
        %p353 = pneg %p134
        %p354 = pneg %p158
        %p355 = pneg %p155
        %p356 = pneg %p179
        %p357 = pneg %p176
        %p358 = pneg %p200
        %p359 = pneg %p197
        %p360 = pneg %p221
        %p361 = pneg %p218
        %p362 = pneg %p247
        %p363 = pneg %p244
        %s364 = sand.u32 %s234, 1
        %s365 = scalar_lea.sflag [#allocation4], %s364
        %s366 = sand.u32 %s234, 1
        %s367 = smul.addr %s366, 8
        %s368 = scalar_lea.vmem [#allocation3], %s367
        %p369 = pneg %p273
        %p370 = pneg %p270
        %p371 = scmp.lt.s32.totalorder %s27, 1
        %s372 = scalar_select %p371, %s27, 1
        %s373 = smul.addr %s372, 2
        %s374 = smul.addr %s373, 8
        %s375 = scalar_lea.vmem %s10, %s374
        %p376 = scmp.lt.s32.totalorder %s27, 1
        %s377 = scalar_select %p376, %s27, 1
        %s378 = smul.addr %s377, 2
        %s379 = smul.addr %s378, 8
        %s380 = scalar_lea.vmem %s0, %s379
        %p381 = scmp.lt.s32.totalorder %s27, 1
        %s382 = scalar_select %p381, %s27, 1
        %s383 = smul.addr %s382, 8
        %s384 = scalar_lea.vmem %s1, %s383
        %p385 = scmp.lt.s32.totalorder %s27, 1
        %s386 = scalar_select %p385, %s27, 1
        %s387 = smul.addr %s386, 2
        %s388 = smul.addr %s387, 8
        %s389 = scalar_lea.vmem %s10, %s388
        %v391 = vld [vmem:[%s2] sm:$0xf]
        %v392 = vld [vmem:[%s2 + $0x4] sm:$0xf]
        %v393 = vld [vmem:[%s2 + $0x8] sm:$0xf]
        %v394 = vld [vmem:[%s2 + $0xc] sm:$0xf]
        %v395 = vld [vmem:[%s3] sm:$0x1]
        %v396 = vld [vmem:[%s4] sm:$0xf]
        %v397 = vld [vmem:[%s4 + $0x4] sm:$0xf]
        %v398 = vld [vmem:[%s4 + $0x8] sm:$0xf]
        %v399 = vld [vmem:[%s4 + $0xc] sm:$0xf]
        %v400 = vld [vmem:[%s380] sm:$0xff]
        %v401 = vpack.c.bf16 %v400, %v400
        %v403 = vlaneseq
        %v404 = vshrl.u32 %v403, 7
        %v405 = vsub.s32 0, %v404
        %v406 = vrot.slane %v395, %v405
        %v412 = vunpack.c.l.b16 %v391
        %v413 = vunpack.c.l.b16 %v392
        %v414 = vunpack.c.l.b16 %v393
        %v415 = vunpack.c.l.b16 %v394
        %v416 = vpack.c.b16 %v413, %v412
        %v417 = vpack.c.b16 %v415, %v414
        %vm420 = vcmask 261120
        %v422 = vsel %vm420, %v401, 0
        %424 = vmatprep.subr.bf16.mxu0 0
        %425 = vmatpush1.bf16.msra.mxu0 %v416
        %426 = vmatprep.subr.bf16.mxu0 0
        %427 = vmatpush1.bf16.msra.mxu0 %v417
        %428 = vmatprep.subr.bf16.mxu0 0
        %429 = vmatpush1.bf16.msra.mxu0 0
        %430 = vmatprep.subr.bf16.mxu0 0
        %431 = vmatpush1.bf16.msra.mxu0 0
        %432 = vmatprep.subr.bf16.mxu0 0
        %433 = vmatpush1.bf16.msra.mxu0 0
        %434 = vmatprep.subr.bf16.mxu0 0
        %435 = vmatpush1.bf16.msra.mxu0 0
        %436 = vmatprep.subr.bf16.mxu0 0
        %437 = vmatpush1.bf16.msra.mxu0 0
        %438 = vmatprep.subr.bf16.mxu0 0
        %439 = vmatpush1.bf16.msra.mxu0 0
        %440 = vmatprep.subr.bf16.mxu0 0
        %441 = vmatpush1.bf16.msra.mxu0 0
        %442 = vmatprep.subr.bf16.mxu0 0
        %443 = vmatpush1.bf16.msra.mxu0 0
        %444 = vmatprep.subr.bf16.mxu0 0
        %445 = vmatpush1.bf16.msra.mxu0 0
        %446 = vmatprep.subr.bf16.mxu0 0
        %447 = vmatpush1.bf16.msra.mxu0 0
        %448 = vmatprep.subr.bf16.mxu0 0
        %449 = vmatpush1.bf16.msra.mxu0 0
        %450 = vmatprep.subr.bf16.mxu0 0
        %451 = vmatpush1.bf16.msra.mxu0 0
        %452 = vmatprep.subr.bf16.mxu0 0
        %453 = vmatpush1.bf16.msra.mxu0 0
        %454 = vmatprep.subr.bf16.mxu0 0
        %455 = vmatpush1.bf16.msra.mxu0 0
        %456 = vmatprep.mubr.bf16.mxu0 0
        %457 = vmatmul.mubr.bf16.gmra.mrb[0].mxu0 %v422
        %v458 = vpop.f32.mrb[0].mxu0
        %v459 = vadd.f32 %v406, %v458
        %v460 = vpop.f32.mrb[0].mxu0
        %v461 = vpop.f32.mrb[0].mxu0
        %v462 = vpop.f32.mrb[0].mxu0
        %463 = vdwg.mxu0
        %465 = vrot.lane.b32.xlu0 %v401, 96
        %v466 = vpop.permute.xlu0 %465
        %v468 = vsel %vm420, %v466, 0
        %470 = vmatprep.subr.bf16.mxu0 0
        %471 = vmatpush1.bf16.msra.mxu0 %v416
        %472 = vmatprep.subr.bf16.mxu0 0
        %473 = vmatpush1.bf16.msra.mxu0 %v417
        %474 = vmatprep.subr.bf16.mxu0 0
        %475 = vmatpush1.bf16.msra.mxu0 0
        %476 = vmatprep.subr.bf16.mxu0 0
        %477 = vmatpush1.bf16.msra.mxu0 0
        %478 = vmatprep.subr.bf16.mxu0 0
        %479 = vmatpush1.bf16.msra.mxu0 0
        %480 = vmatprep.subr.bf16.mxu0 0
        %481 = vmatpush1.bf16.msra.mxu0 0
        %482 = vmatprep.subr.bf16.mxu0 0
        %483 = vmatpush1.bf16.msra.mxu0 0
        %484 = vmatprep.subr.bf16.mxu0 0
        %485 = vmatpush1.bf16.msra.mxu0 0
        %486 = vmatprep.subr.bf16.mxu0 0
        %487 = vmatpush1.bf16.msra.mxu0 0
        %488 = vmatprep.subr.bf16.mxu0 0
        %489 = vmatpush1.bf16.msra.mxu0 0
        %490 = vmatprep.subr.bf16.mxu0 0
        %491 = vmatpush1.bf16.msra.mxu0 0
        %492 = vmatprep.subr.bf16.mxu0 0
        %493 = vmatpush1.bf16.msra.mxu0 0
        %494 = vmatprep.subr.bf16.mxu0 0
        %495 = vmatpush1.bf16.msra.mxu0 0
        %496 = vmatprep.subr.bf16.mxu0 0
        %497 = vmatpush1.bf16.msra.mxu0 0
        %498 = vmatprep.subr.bf16.mxu0 0
        %499 = vmatpush1.bf16.msra.mxu0 0
        %500 = vmatprep.subr.bf16.mxu0 0
        %501 = vmatpush1.bf16.msra.mxu0 0
        %502 = vmatprep.mubr.bf16.mxu0 0
        %503 = vmatmul.mubr.bf16.gmra.mrb[0].mxu0 %v468
        %v504 = vpop.f32.mrb[0].mxu0
        %v505 = vadd.f32 %v406, %v504
        %v506 = vpop.f32.mrb[0].mxu0
        %v507 = vpop.f32.mrb[0].mxu0
        %v508 = vpop.f32.mrb[0].mxu0
        %509 = vdwg.mxu0
        %510 = vrot.lane.b32.xlu0 %v401, 64
        %v511 = vpop.permute.xlu0 %510
        %v513 = vsel %vm420, %v511, 0
        %515 = vmatprep.subr.bf16.mxu0 0
        %516 = vmatpush1.bf16.msra.mxu0 %v416
        %517 = vmatprep.subr.bf16.mxu0 0
        %518 = vmatpush1.bf16.msra.mxu0 %v417
        %519 = vmatprep.subr.bf16.mxu0 0
        %520 = vmatpush1.bf16.msra.mxu0 0
        %521 = vmatprep.subr.bf16.mxu0 0
        %522 = vmatpush1.bf16.msra.mxu0 0
        %523 = vmatprep.subr.bf16.mxu0 0
        %524 = vmatpush1.bf16.msra.mxu0 0
        %525 = vmatprep.subr.bf16.mxu0 0
        %526 = vmatpush1.bf16.msra.mxu0 0
        %527 = vmatprep.subr.bf16.mxu0 0
        %528 = vmatpush1.bf16.msra.mxu0 0
        %529 = vmatprep.subr.bf16.mxu0 0
        %530 = vmatpush1.bf16.msra.mxu0 0
        %531 = vmatprep.subr.bf16.mxu0 0
        %532 = vmatpush1.bf16.msra.mxu0 0
        %533 = vmatprep.subr.bf16.mxu0 0
        %534 = vmatpush1.bf16.msra.mxu0 0
        %535 = vmatprep.subr.bf16.mxu0 0
        %536 = vmatpush1.bf16.msra.mxu0 0
        %537 = vmatprep.subr.bf16.mxu0 0
        %538 = vmatpush1.bf16.msra.mxu0 0
        %539 = vmatprep.subr.bf16.mxu0 0
        %540 = vmatpush1.bf16.msra.mxu0 0
        %541 = vmatprep.subr.bf16.mxu0 0
        %542 = vmatpush1.bf16.msra.mxu0 0
        %543 = vmatprep.subr.bf16.mxu0 0
        %544 = vmatpush1.bf16.msra.mxu0 0
        %545 = vmatprep.subr.bf16.mxu0 0
        %546 = vmatpush1.bf16.msra.mxu0 0
        %547 = vmatprep.mubr.bf16.mxu0 0
        %548 = vmatmul.mubr.bf16.gmra.mrb[0].mxu0 %v513
        %v549 = vpop.f32.mrb[0].mxu0
        %v550 = vadd.f32 %v406, %v549
        %v551 = vpop.f32.mrb[0].mxu0
        %v552 = vpop.f32.mrb[0].mxu0
        %v553 = vpop.f32.mrb[0].mxu0
        %554 = vdwg.mxu0
        %555 = vrot.lane.b32.xlu0 %v401, 32
        %v556 = vpop.permute.xlu0 %555
        %v558 = vsel %vm420, %v556, 0
        %560 = vmatprep.subr.bf16.mxu0 0
        %561 = vmatpush1.bf16.msra.mxu0 %v416
        %562 = vmatprep.subr.bf16.mxu0 0
        %563 = vmatpush1.bf16.msra.mxu0 %v417
        %564 = vmatprep.subr.bf16.mxu0 0
        %565 = vmatpush1.bf16.msra.mxu0 0
        %566 = vmatprep.subr.bf16.mxu0 0
        %567 = vmatpush1.bf16.msra.mxu0 0
        %568 = vmatprep.subr.bf16.mxu0 0
        %569 = vmatpush1.bf16.msra.mxu0 0
        %570 = vmatprep.subr.bf16.mxu0 0
        %571 = vmatpush1.bf16.msra.mxu0 0
        %572 = vmatprep.subr.bf16.mxu0 0
        %573 = vmatpush1.bf16.msra.mxu0 0
        %574 = vmatprep.subr.bf16.mxu0 0
        %575 = vmatpush1.bf16.msra.mxu0 0
        %576 = vmatprep.subr.bf16.mxu0 0
        %577 = vmatpush1.bf16.msra.mxu0 0
        %578 = vmatprep.subr.bf16.mxu0 0
        %579 = vmatpush1.bf16.msra.mxu0 0
        %580 = vmatprep.subr.bf16.mxu0 0
        %581 = vmatpush1.bf16.msra.mxu0 0
        %582 = vmatprep.subr.bf16.mxu0 0
        %583 = vmatpush1.bf16.msra.mxu0 0
        %584 = vmatprep.subr.bf16.mxu0 0
        %585 = vmatpush1.bf16.msra.mxu0 0
        %586 = vmatprep.subr.bf16.mxu0 0
        %587 = vmatpush1.bf16.msra.mxu0 0
        %588 = vmatprep.subr.bf16.mxu0 0
        %589 = vmatpush1.bf16.msra.mxu0 0
        %590 = vmatprep.subr.bf16.mxu0 0
        %591 = vmatpush1.bf16.msra.mxu0 0
        %592 = vmatprep.mubr.bf16.mxu0 0
        %593 = vmatmul.mubr.bf16.gmra.mrb[0].mxu0 %v558
        %v594 = vpop.f32.mrb[0].mxu0
        %v595 = vadd.f32 %v406, %v594
        %v596 = vpop.f32.mrb[0].mxu0
        %v597 = vpop.f32.mrb[0].mxu0
        %v598 = vpop.f32.mrb[0].mxu0
        %599 = vdwg.mxu0
        %v600 = vld [vmem:[%s380 + $0x8] sm:$0xff]
        %v601 = vpack.c.bf16 %v600, %v600
        %v603 = vsel %vm420, %v601, 0
        %605 = vmatprep.subr.bf16.mxu0 0
        %606 = vmatpush1.bf16.msra.mxu0 %v416
        %607 = vmatprep.subr.bf16.mxu0 0
        %608 = vmatpush1.bf16.msra.mxu0 %v417
        %609 = vmatprep.subr.bf16.mxu0 0
        %610 = vmatpush1.bf16.msra.mxu0 0
        %611 = vmatprep.subr.bf16.mxu0 0
        %612 = vmatpush1.bf16.msra.mxu0 0
        %613 = vmatprep.subr.bf16.mxu0 0
        %614 = vmatpush1.bf16.msra.mxu0 0
        %615 = vmatprep.subr.bf16.mxu0 0
        %616 = vmatpush1.bf16.msra.mxu0 0
        %617 = vmatprep.subr.bf16.mxu0 0
        %618 = vmatpush1.bf16.msra.mxu0 0
        %619 = vmatprep.subr.bf16.mxu0 0
        %620 = vmatpush1.bf16.msra.mxu0 0
        %621 = vmatprep.subr.bf16.mxu0 0
        %622 = vmatpush1.bf16.msra.mxu0 0
        %623 = vmatprep.subr.bf16.mxu0 0
        %624 = vmatpush1.bf16.msra.mxu0 0
        %625 = vmatprep.subr.bf16.mxu0 0
        %626 = vmatpush1.bf16.msra.mxu0 0
        %627 = vmatprep.subr.bf16.mxu0 0
        %628 = vmatpush1.bf16.msra.mxu0 0
        %629 = vmatprep.subr.bf16.mxu0 0
        %630 = vmatpush1.bf16.msra.mxu0 0
        %631 = vmatprep.subr.bf16.mxu0 0
        %632 = vmatpush1.bf16.msra.mxu0 0
        %633 = vmatprep.subr.bf16.mxu0 0
        %634 = vmatpush1.bf16.msra.mxu0 0
        %635 = vmatprep.subr.bf16.mxu0 0
        %636 = vmatpush1.bf16.msra.mxu0 0
        %637 = vmatprep.mubr.bf16.mxu0 0
        %638 = vmatmul.mubr.bf16.gmra.mrb[0].mxu0 %v603
        %v639 = vpop.f32.mrb[0].mxu0
        %v640 = vadd.f32 %v406, %v639
        %v641 = vpop.f32.mrb[0].mxu0
        %v642 = vpop.f32.mrb[0].mxu0
        %v643 = vpop.f32.mrb[0].mxu0
        %644 = vdwg.mxu0
        %646 = vrot.lane.b32.xlu0 %v601, 96
        %v647 = vpop.permute.xlu0 %646
        %v649 = vsel %vm420, %v647, 0
        %651 = vmatprep.subr.bf16.mxu0 0
        %652 = vmatpush1.bf16.msra.mxu0 %v416
        %653 = vmatprep.subr.bf16.mxu0 0
        %654 = vmatpush1.bf16.msra.mxu0 %v417
        %655 = vmatprep.subr.bf16.mxu0 0
        %656 = vmatpush1.bf16.msra.mxu0 0
        %657 = vmatprep.subr.bf16.mxu0 0
        %658 = vmatpush1.bf16.msra.mxu0 0
        %659 = vmatprep.subr.bf16.mxu0 0
        %660 = vmatpush1.bf16.msra.mxu0 0
        %661 = vmatprep.subr.bf16.mxu0 0
        %662 = vmatpush1.bf16.msra.mxu0 0
        %663 = vmatprep.subr.bf16.mxu0 0
        %664 = vmatpush1.bf16.msra.mxu0 0
        %665 = vmatprep.subr.bf16.mxu0 0
        %666 = vmatpush1.bf16.msra.mxu0 0
        %667 = vmatprep.subr.bf16.mxu0 0
        %668 = vmatpush1.bf16.msra.mxu0 0
        %669 = vmatprep.subr.bf16.mxu0 0
        %670 = vmatpush1.bf16.msra.mxu0 0
        %671 = vmatprep.subr.bf16.mxu0 0
        %672 = vmatpush1.bf16.msra.mxu0 0
        %673 = vmatprep.subr.bf16.mxu0 0
        %674 = vmatpush1.bf16.msra.mxu0 0
        %675 = vmatprep.subr.bf16.mxu0 0
        %676 = vmatpush1.bf16.msra.mxu0 0
        %677 = vmatprep.subr.bf16.mxu0 0
        %678 = vmatpush1.bf16.msra.mxu0 0
        %679 = vmatprep.subr.bf16.mxu0 0
        %680 = vmatpush1.bf16.msra.mxu0 0
        %681 = vmatprep.subr.bf16.mxu0 0
        %682 = vmatpush1.bf16.msra.mxu0 0
        %683 = vmatprep.mubr.bf16.mxu0 0
        %684 = vmatmul.mubr.bf16.gmra.mrb[0].mxu0 %v649
        %v685 = vpop.f32.mrb[0].mxu0
        %v686 = vadd.f32 %v406, %v685
        %v687 = vpop.f32.mrb[0].mxu0
        %v688 = vpop.f32.mrb[0].mxu0
        %v689 = vpop.f32.mrb[0].mxu0
        %690 = vdwg.mxu0
        %691 = vrot.lane.b32.xlu0 %v601, 64
        %v692 = vpop.permute.xlu0 %691
        %v694 = vsel %vm420, %v692, 0
        %696 = vmatprep.subr.bf16.mxu0 0
        %697 = vmatpush1.bf16.msra.mxu0 %v416
        %698 = vmatprep.subr.bf16.mxu0 0
        %699 = vmatpush1.bf16.msra.mxu0 %v417
        %700 = vmatprep.subr.bf16.mxu0 0
        %701 = vmatpush1.bf16.msra.mxu0 0
        %702 = vmatprep.subr.bf16.mxu0 0
        %703 = vmatpush1.bf16.msra.mxu0 0
        %704 = vmatprep.subr.bf16.mxu0 0
        %705 = vmatpush1.bf16.msra.mxu0 0
        %706 = vmatprep.subr.bf16.mxu0 0
        %707 = vmatpush1.bf16.msra.mxu0 0
        %708 = vmatprep.subr.bf16.mxu0 0
        %709 = vmatpush1.bf16.msra.mxu0 0
        %710 = vmatprep.subr.bf16.mxu0 0
        %711 = vmatpush1.bf16.msra.mxu0 0
        %712 = vmatprep.subr.bf16.mxu0 0
        %713 = vmatpush1.bf16.msra.mxu0 0
        %714 = vmatprep.subr.bf16.mxu0 0
        %715 = vmatpush1.bf16.msra.mxu0 0
        %716 = vmatprep.subr.bf16.mxu0 0
        %717 = vmatpush1.bf16.msra.mxu0 0
        %718 = vmatprep.subr.bf16.mxu0 0
        %719 = vmatpush1.bf16.msra.mxu0 0
        %720 = vmatprep.subr.bf16.mxu0 0
        %721 = vmatpush1.bf16.msra.mxu0 0
        %722 = vmatprep.subr.bf16.mxu0 0
        %723 = vmatpush1.bf16.msra.mxu0 0
        %724 = vmatprep.subr.bf16.mxu0 0
        %725 = vmatpush1.bf16.msra.mxu0 0
        %726 = vmatprep.subr.bf16.mxu0 0
        %727 = vmatpush1.bf16.msra.mxu0 0
        %728 = vmatprep.mubr.bf16.mxu0 0
        %729 = vmatmul.mubr.bf16.gmra.mrb[0].mxu0 %v694
        %v730 = vpop.f32.mrb[0].mxu0
        %v731 = vadd.f32 %v406, %v730
        %v732 = vpop.f32.mrb[0].mxu0
        %v733 = vpop.f32.mrb[0].mxu0
        %v734 = vpop.f32.mrb[0].mxu0
        %735 = vdwg.mxu0
        %736 = vrot.lane.b32.xlu0 %v601, 32
        %v737 = vpop.permute.xlu0 %736
        %v739 = vsel %vm420, %v737, 0
        %741 = vmatprep.subr.bf16.mxu0 0
        %742 = vmatpush1.bf16.msra.mxu0 %v416
        %743 = vmatprep.subr.bf16.mxu0 0
        %744 = vmatpush1.bf16.msra.mxu0 %v417
        %745 = vmatprep.subr.bf16.mxu0 0
        %746 = vmatpush1.bf16.msra.mxu0 0
        %747 = vmatprep.subr.bf16.mxu0 0
        %748 = vmatpush1.bf16.msra.mxu0 0
        %749 = vmatprep.subr.bf16.mxu0 0
        %750 = vmatpush1.bf16.msra.mxu0 0
        %751 = vmatprep.subr.bf16.mxu0 0
        %752 = vmatpush1.bf16.msra.mxu0 0
        %753 = vmatprep.subr.bf16.mxu0 0
        %754 = vmatpush1.bf16.msra.mxu0 0
        %755 = vmatprep.subr.bf16.mxu0 0
        %756 = vmatpush1.bf16.msra.mxu0 0
        %757 = vmatprep.subr.bf16.mxu0 0
        %758 = vmatpush1.bf16.msra.mxu0 0
        %759 = vmatprep.subr.bf16.mxu0 0
        %760 = vmatpush1.bf16.msra.mxu0 0
        %761 = vmatprep.subr.bf16.mxu0 0
        %762 = vmatpush1.bf16.msra.mxu0 0
        %763 = vmatprep.subr.bf16.mxu0 0
        %764 = vmatpush1.bf16.msra.mxu0 0
        %765 = vmatprep.subr.bf16.mxu0 0
        %766 = vmatpush1.bf16.msra.mxu0 0
        %767 = vmatprep.subr.bf16.mxu0 0
        %768 = vmatpush1.bf16.msra.mxu0 0
        %769 = vmatprep.subr.bf16.mxu0 0
        %770 = vmatpush1.bf16.msra.mxu0 0
        %771 = vmatprep.subr.bf16.mxu0 0
        %772 = vmatpush1.bf16.msra.mxu0 0
        %773 = vmatprep.mubr.bf16.mxu0 0
        %774 = vmatmul.mubr.bf16.gmra.mrb[0].mxu0 %v739
        %v775 = vpop.f32.mrb[0].mxu0
        %v776 = vadd.f32 %v406, %v775
        %v777 = vpop.f32.mrb[0].mxu0
        %v778 = vpop.f32.mrb[0].mxu0
        %v779 = vpop.f32.mrb[0].mxu0
        %780 = vdwg.mxu0
        %v781 = vlaneseq
        %v782 = vand.u32 %v781, 127
        %vm783 = vcmp.lt.s32.totalorder %v782, 0
        %v784 = vsub.s32 0, %v782
        %v785 = vsel %vm783, %v784, %v782
        %v786 = vshrl.u32 %v785, 5
        %v787 = vand.u32 %v785, 31
        %v788 = vsub.s32 0, %v787
        %v789 = vsel %vm783, %v788, %v787
        %vm790 = vcmp.ne.s32.totalorder %v789, 0
        %vm791 = vcmp.lt.s32.totalorder %v789, 0
        %vm792 = vmand %vm791, %vm790
        %v793 = vadd.s32 %v789, 32
        %v794 = vsel %vm792, %v793, %v789
        %vm795 = vcmp.ge.s32.totalorder %v794, 16
        %v796 = vsel %vm795, %v776, %v459
        %v797 = vsel %vm795, %v731, %v505
        %v798 = vsel %vm795, %v686, %v550
        %v799 = vsel %vm795, %v640, %v595
        %v800 = vsel %vm795, %v595, %v640
        %v801 = vsel %vm795, %v550, %v686
        %v802 = vsel %vm795, %v505, %v731
        %v803 = vsel %vm795, %v459, %v776
        %v808 = vunpack.c.l.b16 %v396
        %v809 = vunpack.c.l.b16 %v397
        %v810 = vunpack.c.l.b16 %v398
        %v811 = vunpack.c.l.b16 %v399
        %v812 = vpack.c.b16 %v809, %v808
        %v813 = vpack.c.b16 %v811, %v810
        %v817 = vsel %vm420, 0, 0
        %819 = vmatprep.subr.bf16.mxu0 0
        %820 = vmatpush1.bf16.msra.mxu0 %v812
        %821 = vmatprep.subr.bf16.mxu0 0
        %822 = vmatpush1.bf16.msra.mxu0 %v813
        %823 = vmatprep.subr.bf16.mxu0 0
        %824 = vmatpush1.bf16.msra.mxu0 0
        %825 = vmatprep.subr.bf16.mxu0 0
        %826 = vmatpush1.bf16.msra.mxu0 0
        %827 = vmatprep.subr.bf16.mxu0 0
        %828 = vmatpush1.bf16.msra.mxu0 0
        %829 = vmatprep.subr.bf16.mxu0 0
        %830 = vmatpush1.bf16.msra.mxu0 0
        %831 = vmatprep.subr.bf16.mxu0 0
        %832 = vmatpush1.bf16.msra.mxu0 0
        %833 = vmatprep.subr.bf16.mxu0 0
        %834 = vmatpush1.bf16.msra.mxu0 0
        %835 = vmatprep.subr.bf16.mxu0 0
        %836 = vmatpush1.bf16.msra.mxu0 0
        %837 = vmatprep.subr.bf16.mxu0 0
        %838 = vmatpush1.bf16.msra.mxu0 0
        %839 = vmatprep.subr.bf16.mxu0 0
        %840 = vmatpush1.bf16.msra.mxu0 0
        %841 = vmatprep.subr.bf16.mxu0 0
        %842 = vmatpush1.bf16.msra.mxu0 0
        %843 = vmatprep.subr.bf16.mxu0 0
        %844 = vmatpush1.bf16.msra.mxu0 0
        %845 = vmatprep.subr.bf16.mxu0 0
        %846 = vmatpush1.bf16.msra.mxu0 0
        %847 = vmatprep.subr.bf16.mxu0 0
        %848 = vmatpush1.bf16.msra.mxu0 0
        %849 = vmatprep.subr.bf16.mxu0 0
        %850 = vmatpush1.bf16.msra.mxu0 0
        %851 = vmatprep.mubr.bf16.mxu0 0
        %852 = vmatmul.mubr.bf16.gmra.mrb[0].mxu0 %v817
        %v853 = vpop.f32.mrb[0].mxu0
        %v854 = vadd.f32 0.0, %v853
        %v855 = vpop.f32.mrb[0].mxu0
        %v856 = vpop.f32.mrb[0].mxu0
        %v857 = vpop.f32.mrb[0].mxu0
        %858 = vdwg.mxu0
        %v859 = vadd.f32 %v796, %v854
        %v860 = vxor.u32 %v859, 2147483648
        %v861 = vmul.f32 %v860, 1.442695
        %v862 = vpow.pop %v861
        %v863 = vadd.f32 %v862, 1.0
        %v864 = vrcp.pop %v863
        %v865 = vmul.f32 1.0, %v864
        %v866 = vtanh.pop %v859
        %v867 = vmul.f32 %v865, 0.0
        %869 = vrot.lane.b32.xlu0 %v866, 64
        %v870 = vpop.permute.xlu0 %869
        %v872 = vmul.f32 %v865, %v870
        %874 = vrot.lane.b32.xlu0 %v872, 32
        %v875 = vpop.permute.xlu0 %874
        %v877 = vadd.f32 %v867, %v875
        %v878 = vtanh.pop %v877
        %880 = vrot.lane.b32.xlu0 %v878, 64
        %v881 = vpop.permute.xlu0 %880
        %v883 = vmul.f32 %v865, %v881
        %v884 = vpack.c.bf16 %v883, %v883
        %886 = vrot.lane.b32.xlu0 %v884, 32
        %v887 = vpop.permute.xlu0 %886
        %v889 = vsel %vm420, %v887, 0
        %891 = vmatprep.subr.bf16.mxu0 0
        %892 = vmatpush1.bf16.msra.mxu0 %v812
        %893 = vmatprep.subr.bf16.mxu0 0
        %894 = vmatpush1.bf16.msra.mxu0 %v813
        %895 = vmatprep.subr.bf16.mxu0 0
        %896 = vmatpush1.bf16.msra.mxu0 0
        %897 = vmatprep.subr.bf16.mxu0 0
        %898 = vmatpush1.bf16.msra.mxu0 0
        %899 = vmatprep.subr.bf16.mxu0 0
        %900 = vmatpush1.bf16.msra.mxu0 0
        %901 = vmatprep.subr.bf16.mxu0 0
        %902 = vmatpush1.bf16.msra.mxu0 0
        %903 = vmatprep.subr.bf16.mxu0 0
        %904 = vmatpush1.bf16.msra.mxu0 0
        %905 = vmatprep.subr.bf16.mxu0 0
        %906 = vmatpush1.bf16.msra.mxu0 0
        %907 = vmatprep.subr.bf16.mxu0 0
        %908 = vmatpush1.bf16.msra.mxu0 0
        %909 = vmatprep.subr.bf16.mxu0 0
        %910 = vmatpush1.bf16.msra.mxu0 0
        %911 = vmatprep.subr.bf16.mxu0 0
        %912 = vmatpush1.bf16.msra.mxu0 0
        %913 = vmatprep.subr.bf16.mxu0 0
        %914 = vmatpush1.bf16.msra.mxu0 0
        %915 = vmatprep.subr.bf16.mxu0 0
        %916 = vmatpush1.bf16.msra.mxu0 0
        %917 = vmatprep.subr.bf16.mxu0 0
        %918 = vmatpush1.bf16.msra.mxu0 0
        %919 = vmatprep.subr.bf16.mxu0 0
        %920 = vmatpush1.bf16.msra.mxu0 0
        %921 = vmatprep.subr.bf16.mxu0 0
        %922 = vmatpush1.bf16.msra.mxu0 0
        %923 = vmatprep.mubr.bf16.mxu0 0
        %924 = vmatmul.mubr.bf16.gmra.mrb[0].mxu0 %v889
        %v925 = vpop.f32.mrb[0].mxu0
        %v926 = vadd.f32 0.0, %v925
        %v927 = vpop.f32.mrb[0].mxu0
        %v928 = vpop.f32.mrb[0].mxu0
        %v929 = vpop.f32.mrb[0].mxu0
        %930 = vdwg.mxu0
        %v931 = vadd.f32 %v797, %v926
        %v932 = vxor.u32 %v931, 2147483648
        %v933 = vmul.f32 %v932, 1.442695
        %v934 = vpow.pop %v933
        %v935 = vadd.f32 %v934, 1.0
        %v936 = vrcp.pop %v935
        %v937 = vmul.f32 1.0, %v936
        %v938 = vtanh.pop %v931
        %v939 = vmul.f32 %v937, %v877
        %941 = vrot.lane.b32.xlu0 %v938, 64
        %v942 = vpop.permute.xlu0 %941
        %v944 = vmul.f32 %v937, %v942
        %946 = vrot.lane.b32.xlu0 %v944, 32
        %v947 = vpop.permute.xlu0 %946
        %v949 = vadd.f32 %v939, %v947
        %v950 = vtanh.pop %v949
        %952 = vrot.lane.b32.xlu0 %v950, 64
        %v953 = vpop.permute.xlu0 %952
        %v955 = vmul.f32 %v937, %v953
        %v956 = vpack.c.bf16 %v955, %v955
        %958 = vrot.lane.b32.xlu0 %v956, 32
        %v959 = vpop.permute.xlu0 %958
        %v961 = vsel %vm420, %v959, 0
        %963 = vmatprep.subr.bf16.mxu0 0
        %964 = vmatpush1.bf16.msra.mxu0 %v812
        %965 = vmatprep.subr.bf16.mxu0 0
        %966 = vmatpush1.bf16.msra.mxu0 %v813
        %967 = vmatprep.subr.bf16.mxu0 0
        %968 = vmatpush1.bf16.msra.mxu0 0
        %969 = vmatprep.subr.bf16.mxu0 0
        %970 = vmatpush1.bf16.msra.mxu0 0
        %971 = vmatprep.subr.bf16.mxu0 0
        %972 = vmatpush1.bf16.msra.mxu0 0
        %973 = vmatprep.subr.bf16.mxu0 0
        %974 = vmatpush1.bf16.msra.mxu0 0
        %975 = vmatprep.subr.bf16.mxu0 0
        %976 = vmatpush1.bf16.msra.mxu0 0
        %977 = vmatprep.subr.bf16.mxu0 0
        %978 = vmatpush1.bf16.msra.mxu0 0
        %979 = vmatprep.subr.bf16.mxu0 0
        %980 = vmatpush1.bf16.msra.mxu0 0
        %981 = vmatprep.subr.bf16.mxu0 0
        %982 = vmatpush1.bf16.msra.mxu0 0
        %983 = vmatprep.subr.bf16.mxu0 0
        %984 = vmatpush1.bf16.msra.mxu0 0
        %985 = vmatprep.subr.bf16.mxu0 0
        %986 = vmatpush1.bf16.msra.mxu0 0
        %987 = vmatprep.subr.bf16.mxu0 0
        %988 = vmatpush1.bf16.msra.mxu0 0
        %989 = vmatprep.subr.bf16.mxu0 0
        %990 = vmatpush1.bf16.msra.mxu0 0
        %991 = vmatprep.subr.bf16.mxu0 0
        %992 = vmatpush1.bf16.msra.mxu0 0
        %993 = vmatprep.subr.bf16.mxu0 0
        %994 = vmatpush1.bf16.msra.mxu0 0
        %995 = vmatprep.mubr.bf16.mxu0 0
        %996 = vmatmul.mubr.bf16.gmra.mrb[0].mxu0 %v961
        %v997 = vpop.f32.mrb[0].mxu0
        %v998 = vadd.f32 0.0, %v997
        %v999 = vpop.f32.mrb[0].mxu0
        %v1000 = vpop.f32.mrb[0].mxu0
        %v1001 = vpop.f32.mrb[0].mxu0
        %1002 = vdwg.mxu0
        %v1003 = vadd.f32 %v798, %v998
        %v1004 = vxor.u32 %v1003, 2147483648
        %v1005 = vmul.f32 %v1004, 1.442695
        %v1006 = vpow.pop %v1005
        %v1007 = vadd.f32 %v1006, 1.0
        %v1008 = vrcp.pop %v1007
        %v1009 = vmul.f32 1.0, %v1008
        %v1010 = vtanh.pop %v1003
        %v1011 = vmul.f32 %v1009, %v949
        %1013 = vrot.lane.b32.xlu0 %v1010, 64
        %v1014 = vpop.permute.xlu0 %1013
        %v1016 = vmul.f32 %v1009, %v1014
        %1018 = vrot.lane.b32.xlu0 %v1016, 32
        %v1019 = vpop.permute.xlu0 %1018
        %v1021 = vadd.f32 %v1011, %v1019
        %v1022 = vtanh.pop %v1021
        %1024 = vrot.lane.b32.xlu0 %v1022, 64
        %v1025 = vpop.permute.xlu0 %1024
        %v1027 = vmul.f32 %v1009, %v1025
        %v1028 = vpack.c.bf16 %v1027, %v1027
        %1030 = vrot.lane.b32.xlu0 %v1028, 32
        %v1031 = vpop.permute.xlu0 %1030
        %v1033 = vsel %vm420, %v1031, 0
        %1035 = vmatprep.subr.bf16.mxu0 0
        %1036 = vmatpush1.bf16.msra.mxu0 %v812
        %1037 = vmatprep.subr.bf16.mxu0 0
        %1038 = vmatpush1.bf16.msra.mxu0 %v813
        %1039 = vmatprep.subr.bf16.mxu0 0
        %1040 = vmatpush1.bf16.msra.mxu0 0
        %1041 = vmatprep.subr.bf16.mxu0 0
        %1042 = vmatpush1.bf16.msra.mxu0 0
        %1043 = vmatprep.subr.bf16.mxu0 0
        %1044 = vmatpush1.bf16.msra.mxu0 0
        %1045 = vmatprep.subr.bf16.mxu0 0
        %1046 = vmatpush1.bf16.msra.mxu0 0
        %1047 = vmatprep.subr.bf16.mxu0 0
        %1048 = vmatpush1.bf16.msra.mxu0 0
        %1049 = vmatprep.subr.bf16.mxu0 0
        %1050 = vmatpush1.bf16.msra.mxu0 0
        %1051 = vmatprep.subr.bf16.mxu0 0
        %1052 = vmatpush1.bf16.msra.mxu0 0
        %1053 = vmatprep.subr.bf16.mxu0 0
        %1054 = vmatpush1.bf16.msra.mxu0 0
        %1055 = vmatprep.subr.bf16.mxu0 0
        %1056 = vmatpush1.bf16.msra.mxu0 0
        %1057 = vmatprep.subr.bf16.mxu0 0
        %1058 = vmatpush1.bf16.msra.mxu0 0
        %1059 = vmatprep.subr.bf16.mxu0 0
        %1060 = vmatpush1.bf16.msra.mxu0 0
        %1061 = vmatprep.subr.bf16.mxu0 0
        %1062 = vmatpush1.bf16.msra.mxu0 0
        %1063 = vmatprep.subr.bf16.mxu0 0
        %1064 = vmatpush1.bf16.msra.mxu0 0
        %1065 = vmatprep.subr.bf16.mxu0 0
        %1066 = vmatpush1.bf16.msra.mxu0 0
        %1067 = vmatprep.mubr.bf16.mxu0 0
        %1068 = vmatmul.mubr.bf16.gmra.mrb[0].mxu0 %v1033
        %v1069 = vpop.f32.mrb[0].mxu0
        %v1070 = vadd.f32 0.0, %v1069
        %v1071 = vpop.f32.mrb[0].mxu0
        %v1072 = vpop.f32.mrb[0].mxu0
        %v1073 = vpop.f32.mrb[0].mxu0
        %1074 = vdwg.mxu0
        %v1075 = vadd.f32 %v799, %v1070
        %v1076 = vxor.u32 %v1075, 2147483648
        %v1077 = vmul.f32 %v1076, 1.442695
        %v1078 = vpow.pop %v1077
        %v1079 = vadd.f32 %v1078, 1.0
        %v1080 = vrcp.pop %v1079
        %v1081 = vmul.f32 1.0, %v1080
        %v1082 = vtanh.pop %v1075
        %v1083 = vmul.f32 %v1081, %v1021
        %1085 = vrot.lane.b32.xlu0 %v1082, 64
        %v1086 = vpop.permute.xlu0 %1085
        %v1088 = vmul.f32 %v1081, %v1086
        %1090 = vrot.lane.b32.xlu0 %v1088, 32
        %v1091 = vpop.permute.xlu0 %1090
        %v1093 = vadd.f32 %v1083, %v1091
        %v1094 = vtanh.pop %v1093
        %1096 = vrot.lane.b32.xlu0 %v1094, 64
        %v1097 = vpop.permute.xlu0 %1096
        %v1099 = vmul.f32 %v1081, %v1097
        %v1100 = vpack.c.bf16 %v1099, %v1099
        %1102 = vrot.lane.b32.xlu0 %v1100, 32
        %v1103 = vpop.permute.xlu0 %1102
        %v1105 = vsel %vm420, %v1103, 0
        %1107 = vmatprep.subr.bf16.mxu0 0
        %1108 = vmatpush1.bf16.msra.mxu0 %v812
        %1109 = vmatprep.subr.bf16.mxu0 0
        %1110 = vmatpush1.bf16.msra.mxu0 %v813
        %1111 = vmatprep.subr.bf16.mxu0 0
        %1112 = vmatpush1.bf16.msra.mxu0 0
        %1113 = vmatprep.subr.bf16.mxu0 0
        %1114 = vmatpush1.bf16.msra.mxu0 0
        %1115 = vmatprep.subr.bf16.mxu0 0
        %1116 = vmatpush1.bf16.msra.mxu0 0
        %1117 = vmatprep.subr.bf16.mxu0 0
        %1118 = vmatpush1.bf16.msra.mxu0 0
        %1119 = vmatprep.subr.bf16.mxu0 0
        %1120 = vmatpush1.bf16.msra.mxu0 0
        %1121 = vmatprep.subr.bf16.mxu0 0
        %1122 = vmatpush1.bf16.msra.mxu0 0
        %1123 = vmatprep.subr.bf16.mxu0 0
        %1124 = vmatpush1.bf16.msra.mxu0 0
        %1125 = vmatprep.subr.bf16.mxu0 0
        %1126 = vmatpush1.bf16.msra.mxu0 0
        %1127 = vmatprep.subr.bf16.mxu0 0
        %1128 = vmatpush1.bf16.msra.mxu0 0
        %1129 = vmatprep.subr.bf16.mxu0 0
        %1130 = vmatpush1.bf16.msra.mxu0 0
        %1131 = vmatprep.subr.bf16.mxu0 0
        %1132 = vmatpush1.bf16.msra.mxu0 0
        %1133 = vmatprep.subr.bf16.mxu0 0
        %1134 = vmatpush1.bf16.msra.mxu0 0
        %1135 = vmatprep.subr.bf16.mxu0 0
        %1136 = vmatpush1.bf16.msra.mxu0 0
        %1137 = vmatprep.subr.bf16.mxu0 0
        %1138 = vmatpush1.bf16.msra.mxu0 0
        %1139 = vmatprep.mubr.bf16.mxu0 0
        %1140 = vmatmul.mubr.bf16.gmra.mrb[0].mxu0 %v1105
        %v1141 = vpop.f32.mrb[0].mxu0
        %v1142 = vadd.f32 0.0, %v1141
        %v1143 = vpop.f32.mrb[0].mxu0
        %v1144 = vpop.f32.mrb[0].mxu0
        %v1145 = vpop.f32.mrb[0].mxu0
        %1146 = vdwg.mxu0
        %v1147 = vadd.f32 %v800, %v1142
        %v1148 = vxor.u32 %v1147, 2147483648
        %v1149 = vmul.f32 %v1148, 1.442695
        %v1150 = vpow.pop %v1149
        %v1151 = vadd.f32 %v1150, 1.0
        %v1152 = vrcp.pop %v1151
        %v1153 = vmul.f32 1.0, %v1152
        %v1154 = vtanh.pop %v1147
        %v1155 = vmul.f32 %v1153, %v1093
        %1157 = vrot.lane.b32.xlu0 %v1154, 64
        %v1158 = vpop.permute.xlu0 %1157
        %v1160 = vmul.f32 %v1153, %v1158
        %1162 = vrot.lane.b32.xlu0 %v1160, 32
        %v1163 = vpop.permute.xlu0 %1162
        %v1165 = vadd.f32 %v1155, %v1163
        %v1166 = vtanh.pop %v1165
        %1168 = vrot.lane.b32.xlu0 %v1166, 64
        %v1169 = vpop.permute.xlu0 %1168
        %v1171 = vmul.f32 %v1153, %v1169
        %v1172 = vpack.c.bf16 %v1171, %v1171
        %1174 = vrot.lane.b32.xlu0 %v1172, 32
        %v1175 = vpop.permute.xlu0 %1174
        %v1177 = vsel %vm420, %v1175, 0
        %1179 = vmatprep.subr.bf16.mxu0 0
        %1180 = vmatpush1.bf16.msra.mxu0 %v812
        %1181 = vmatprep.subr.bf16.mxu0 0
        %1182 = vmatpush1.bf16.msra.mxu0 %v813
        %1183 = vmatprep.subr.bf16.mxu0 0
        %1184 = vmatpush1.bf16.msra.mxu0 0
        %1185 = vmatprep.subr.bf16.mxu0 0
        %1186 = vmatpush1.bf16.msra.mxu0 0
        %1187 = vmatprep.subr.bf16.mxu0 0
        %1188 = vmatpush1.bf16.msra.mxu0 0
        %1189 = vmatprep.subr.bf16.mxu0 0
        %1190 = vmatpush1.bf16.msra.mxu0 0
        %1191 = vmatprep.subr.bf16.mxu0 0
        %1192 = vmatpush1.bf16.msra.mxu0 0
        %1193 = vmatprep.subr.bf16.mxu0 0
        %1194 = vmatpush1.bf16.msra.mxu0 0
        %1195 = vmatprep.subr.bf16.mxu0 0
        %1196 = vmatpush1.bf16.msra.mxu0 0
        %1197 = vmatprep.subr.bf16.mxu0 0
        %1198 = vmatpush1.bf16.msra.mxu0 0
        %1199 = vmatprep.subr.bf16.mxu0 0
        %1200 = vmatpush1.bf16.msra.mxu0 0
        %1201 = vmatprep.subr.bf16.mxu0 0
        %1202 = vmatpush1.bf16.msra.mxu0 0
        %1203 = vmatprep.subr.bf16.mxu0 0
        %1204 = vmatpush1.bf16.msra.mxu0 0
        %1205 = vmatprep.subr.bf16.mxu0 0
        %1206 = vmatpush1.bf16.msra.mxu0 0
        %1207 = vmatprep.subr.bf16.mxu0 0
        %1208 = vmatpush1.bf16.msra.mxu0 0
        %1209 = vmatprep.subr.bf16.mxu0 0
        %1210 = vmatpush1.bf16.msra.mxu0 0
        %1211 = vmatprep.mubr.bf16.mxu0 0
        %1212 = vmatmul.mubr.bf16.gmra.mrb[0].mxu0 %v1177
        %v1213 = vpop.f32.mrb[0].mxu0
        %v1214 = vadd.f32 0.0, %v1213
        %v1215 = vpop.f32.mrb[0].mxu0
        %v1216 = vpop.f32.mrb[0].mxu0
        %v1217 = vpop.f32.mrb[0].mxu0
        %1218 = vdwg.mxu0
        %v1219 = vadd.f32 %v801, %v1214
        %v1220 = vxor.u32 %v1219, 2147483648
        %v1221 = vmul.f32 %v1220, 1.442695
        %v1222 = vpow.pop %v1221
        %v1223 = vadd.f32 %v1222, 1.0
        %v1224 = vrcp.pop %v1223
        %v1225 = vmul.f32 1.0, %v1224
        %v1226 = vtanh.pop %v1219
        %v1227 = vmul.f32 %v1225, %v1165
        %1229 = vrot.lane.b32.xlu0 %v1226, 64
        %v1230 = vpop.permute.xlu0 %1229
        %v1232 = vmul.f32 %v1225, %v1230
        %1234 = vrot.lane.b32.xlu0 %v1232, 32
        %v1235 = vpop.permute.xlu0 %1234
        %v1237 = vadd.f32 %v1227, %v1235
        %v1238 = vtanh.pop %v1237
        %1240 = vrot.lane.b32.xlu0 %v1238, 64
        %v1241 = vpop.permute.xlu0 %1240
        %v1243 = vmul.f32 %v1225, %v1241
        %v1244 = vpack.c.bf16 %v1243, %v1243
        %1246 = vrot.lane.b32.xlu0 %v1244, 32
        %v1247 = vpop.permute.xlu0 %1246
        %v1249 = vsel %vm420, %v1247, 0
        %1251 = vmatprep.subr.bf16.mxu0 0
        %1252 = vmatpush1.bf16.msra.mxu0 %v812
        %1253 = vmatprep.subr.bf16.mxu0 0
        %1254 = vmatpush1.bf16.msra.mxu0 %v813
        %1255 = vmatprep.subr.bf16.mxu0 0
        %1256 = vmatpush1.bf16.msra.mxu0 0
        %1257 = vmatprep.subr.bf16.mxu0 0
        %1258 = vmatpush1.bf16.msra.mxu0 0
        %1259 = vmatprep.subr.bf16.mxu0 0
        %1260 = vmatpush1.bf16.msra.mxu0 0
        %1261 = vmatprep.subr.bf16.mxu0 0
        %1262 = vmatpush1.bf16.msra.mxu0 0
        %1263 = vmatprep.subr.bf16.mxu0 0
        %1264 = vmatpush1.bf16.msra.mxu0 0
        %1265 = vmatprep.subr.bf16.mxu0 0
        %1266 = vmatpush1.bf16.msra.mxu0 0
        %1267 = vmatprep.subr.bf16.mxu0 0
        %1268 = vmatpush1.bf16.msra.mxu0 0
        %1269 = vmatprep.subr.bf16.mxu0 0
        %1270 = vmatpush1.bf16.msra.mxu0 0
        %1271 = vmatprep.subr.bf16.mxu0 0
        %1272 = vmatpush1.bf16.msra.mxu0 0
        %1273 = vmatprep.subr.bf16.mxu0 0
        %1274 = vmatpush1.bf16.msra.mxu0 0
        %1275 = vmatprep.subr.bf16.mxu0 0
        %1276 = vmatpush1.bf16.msra.mxu0 0
        %1277 = vmatprep.subr.bf16.mxu0 0
        %1278 = vmatpush1.bf16.msra.mxu0 0
        %1279 = vmatprep.subr.bf16.mxu0 0
        %1280 = vmatpush1.bf16.msra.mxu0 0
        %1281 = vmatprep.subr.bf16.mxu0 0
        %1282 = vmatpush1.bf16.msra.mxu0 0
        %1283 = vmatprep.mubr.bf16.mxu0 0
        %1284 = vmatmul.mubr.bf16.gmra.mrb[0].mxu0 %v1249
        %v1285 = vpop.f32.mrb[0].mxu0
        %v1286 = vadd.f32 0.0, %v1285
        %v1287 = vpop.f32.mrb[0].mxu0
        %v1288 = vpop.f32.mrb[0].mxu0
        %v1289 = vpop.f32.mrb[0].mxu0
        %1290 = vdwg.mxu0
        %v1291 = vadd.f32 %v802, %v1286
        %v1292 = vxor.u32 %v1291, 2147483648
        %v1293 = vmul.f32 %v1292, 1.442695
        %v1294 = vpow.pop %v1293
        %v1295 = vadd.f32 %v1294, 1.0
        %v1296 = vrcp.pop %v1295
        %v1297 = vmul.f32 1.0, %v1296
        %v1298 = vtanh.pop %v1291
        %v1299 = vmul.f32 %v1297, %v1237
        %1301 = vrot.lane.b32.xlu0 %v1298, 64
        %v1302 = vpop.permute.xlu0 %1301
        %v1304 = vmul.f32 %v1297, %v1302
        %1306 = vrot.lane.b32.xlu0 %v1304, 32
        %v1307 = vpop.permute.xlu0 %1306
        %v1309 = vadd.f32 %v1299, %v1307
        %v1310 = vtanh.pop %v1309
        %1312 = vrot.lane.b32.xlu0 %v1310, 64
        %v1313 = vpop.permute.xlu0 %1312
        %v1315 = vmul.f32 %v1297, %v1313
        %v1316 = vpack.c.bf16 %v1315, %v1315
        %1318 = vrot.lane.b32.xlu0 %v1316, 32
        %v1319 = vpop.permute.xlu0 %1318
        %v1321 = vsel %vm420, %v1319, 0
        %1323 = vmatprep.subr.bf16.mxu0 0
        %1324 = vmatpush1.bf16.msra.mxu0 %v812
        %1325 = vmatprep.subr.bf16.mxu0 0
        %1326 = vmatpush1.bf16.msra.mxu0 %v813
        %1327 = vmatprep.subr.bf16.mxu0 0
        %1328 = vmatpush1.bf16.msra.mxu0 0
        %1329 = vmatprep.subr.bf16.mxu0 0
        %1330 = vmatpush1.bf16.msra.mxu0 0
        %1331 = vmatprep.subr.bf16.mxu0 0
        %1332 = vmatpush1.bf16.msra.mxu0 0
        %1333 = vmatprep.subr.bf16.mxu0 0
        %1334 = vmatpush1.bf16.msra.mxu0 0
        %1335 = vmatprep.subr.bf16.mxu0 0
        %1336 = vmatpush1.bf16.msra.mxu0 0
        %1337 = vmatprep.subr.bf16.mxu0 0
        %1338 = vmatpush1.bf16.msra.mxu0 0
        %1339 = vmatprep.subr.bf16.mxu0 0
        %1340 = vmatpush1.bf16.msra.mxu0 0
        %1341 = vmatprep.subr.bf16.mxu0 0
        %1342 = vmatpush1.bf16.msra.mxu0 0
        %1343 = vmatprep.subr.bf16.mxu0 0
        %1344 = vmatpush1.bf16.msra.mxu0 0
        %1345 = vmatprep.subr.bf16.mxu0 0
        %1346 = vmatpush1.bf16.msra.mxu0 0
        %1347 = vmatprep.subr.bf16.mxu0 0
        %1348 = vmatpush1.bf16.msra.mxu0 0
        %1349 = vmatprep.subr.bf16.mxu0 0
        %1350 = vmatpush1.bf16.msra.mxu0 0
        %1351 = vmatprep.subr.bf16.mxu0 0
        %1352 = vmatpush1.bf16.msra.mxu0 0
        %1353 = vmatprep.subr.bf16.mxu0 0
        %1354 = vmatpush1.bf16.msra.mxu0 0
        %1355 = vmatprep.mubr.bf16.mxu0 0
        %1356 = vmatmul.mubr.bf16.gmra.mrb[0].mxu0 %v1321
        %v1357 = vpop.f32.mrb[0].mxu0
        %v1358 = vadd.f32 0.0, %v1357
        %v1359 = vpop.f32.mrb[0].mxu0
        %v1360 = vpop.f32.mrb[0].mxu0
        %v1361 = vpop.f32.mrb[0].mxu0
        %1362 = vdwg.mxu0
        %v1363 = vadd.f32 %v803, %v1358
        %v1364 = vxor.u32 %v1363, 2147483648
        %v1365 = vmul.f32 %v1364, 1.442695
        %v1366 = vpow.pop %v1365
        %v1367 = vadd.f32 %v1366, 1.0
        %v1368 = vrcp.pop %v1367
        %v1369 = vmul.f32 1.0, %v1368
        %v1370 = vtanh.pop %v1363
        %v1371 = vmul.f32 %v1369, %v1309
        %1373 = vrot.lane.b32.xlu0 %v1370, 64
        %v1374 = vpop.permute.xlu0 %1373
        %v1376 = vmul.f32 %v1369, %v1374
        %1378 = vrot.lane.b32.xlu0 %v1376, 32
        %v1379 = vpop.permute.xlu0 %1378
        %v1381 = vadd.f32 %v1371, %v1379
        %v1382 = vtanh.pop %v1381
        %1384 = vrot.lane.b32.xlu0 %v1382, 64
        %v1385 = vpop.permute.xlu0 %1384
        %v1387 = vmul.f32 %v1369, %v1385
        %1389 = vrot.lane.b32.xlu0 %v883, 32
        %v1390 = vpop.permute.xlu0 %1389
        %1393 = vrot.lane.b32.xlu0 %v1387, 32
        %v1394 = vpop.permute.xlu0 %1393
        %vm1396 = vcmask 130048
        %v1397 = vsel %vm1396, %v1390, %v1394
        %1399 = vrot.lane.b32.xlu0 %v955, 32
        %v1400 = vpop.permute.xlu0 %1399
        %1403 = vrot.lane.b32.xlu0 %v1315, 32
        %v1404 = vpop.permute.xlu0 %1403
        %v1406 = vsel %vm1396, %v1400, %v1404
        %1408 = vrot.lane.b32.xlu0 %v1027, 32
        %v1409 = vpop.permute.xlu0 %1408
        %1412 = vrot.lane.b32.xlu0 %v1243, 32
        %v1413 = vpop.permute.xlu0 %1412
        %v1415 = vsel %vm1396, %v1409, %v1413
        %1417 = vrot.lane.b32.xlu0 %v1099, 32
        %v1418 = vpop.permute.xlu0 %1417
        %1421 = vrot.lane.b32.xlu0 %v1171, 32
        %v1422 = vpop.permute.xlu0 %1421
        %v1424 = vsel %vm1396, %v1418, %v1422
        %v1425 = vsel %vm1396, %v1422, %v1418
        %v1426 = vsel %vm1396, %v1413, %v1409
        %v1427 = vsel %vm1396, %v1404, %v1400
        %v1428 = vsel %vm1396, %v1394, %v1390
        %1430 = vrot.lane.b32.xlu0 %v1406, 32
        %v1431 = vpop.permute.xlu0 %1430
        %1434 = vrot.lane.b32.xlu0 %v1415, 64
        %v1435 = vpop.permute.xlu0 %1434
        %1438 = vrot.lane.b32.xlu0 %v1424, 96
        %v1439 = vpop.permute.xlu0 %1438
        %1442 = vrot.lane.b32.xlu0 %v1426, 32
        %v1443 = vpop.permute.xlu0 %1442
        %1446 = vrot.lane.b32.xlu0 %v1427, 64
        %v1447 = vpop.permute.xlu0 %1446
        %1450 = vrot.lane.b32.xlu0 %v1428, 96
        %v1451 = vpop.permute.xlu0 %1450
        %v1453 = vsel %vm420, %v1397, %v1431
        %vm1454 = vcmask 523264
        %v1455 = vsel %vm1454, %v1453, %v1435
        %vm1456 = vcmask 785408
        %v1457 = vsel %vm1456, %v1455, %v1439
        %v1458 = vsel %vm420, %v1425, %v1443
        %v1459 = vsel %vm1454, %v1458, %v1447
        %v1460 = vsel %vm1456, %v1459, %v1451
        %1461 = vst [vmem:[%s389] sm:$0xff] %v1457
        %1462 = vst [vmem:[%s389 + $0x8] sm:$0xff] %v1460
        %v1463 = vpack.c.bf16 %v1457, %v1457
        %v1464 = vpack.c.bf16 %v1460, %v1460
        %v1465 = vld [vmem:[%s5] sm:$0xff]
        %v1466 = vld [vmem:[%s5 + $0x8] sm:$0xff]
        %v1467 = vld [vmem:[%s5 + $0x10] sm:$0xff]
        %v1468 = vld [vmem:[%s5 + $0x18] sm:$0xff]
        %v1469 = vld [vmem:[%s5 + $0x20] sm:$0xff]
        %v1470 = vld [vmem:[%s5 + $0x28] sm:$0xff]
        %v1471 = vld [vmem:[%s5 + $0x30] sm:$0xff]
        %v1472 = vld [vmem:[%s5 + $0x38] sm:$0xff]
        %v1473 = vld [vmem:[%s5 + $0x40] sm:$0xff]
        %v1474 = vld [vmem:[%s5 + $0x48] sm:$0xff]
        %v1475 = vld [vmem:[%s5 + $0x50] sm:$0xff]
        %v1476 = vld [vmem:[%s5 + $0x58] sm:$0xff]
        %v1477 = vld [vmem:[%s5 + $0x60] sm:$0xff]
        %v1478 = vld [vmem:[%s5 + $0x68] sm:$0xff]
        %v1479 = vld [vmem:[%s5 + $0x70] sm:$0xff]
        %v1480 = vld [vmem:[%s5 + $0x78] sm:$0xff]
        %v1481 = vld [vmem:[%s5 + $0x80] sm:$0xff]
        %v1482 = vld [vmem:[%s5 + $0x88] sm:$0xff]
        %v1483 = vld [vmem:[%s5 + $0x90] sm:$0xff]
        %v1484 = vld [vmem:[%s5 + $0x98] sm:$0xff]
        %v1485 = vld [vmem:[%s5 + $0xa0] sm:$0xff]
        %v1486 = vld [vmem:[%s5 + $0xa8] sm:$0xff]
        %v1487 = vld [vmem:[%s5 + $0xb0] sm:$0xff]
        %v1488 = vld [vmem:[%s5 + $0xb8] sm:$0xff]
        %v1489 = vld [vmem:[%s5 + $0xc0] sm:$0xff]
        %v1490 = vld [vmem:[%s5 + $0xc8] sm:$0xff]
        %v1491 = vld [vmem:[%s5 + $0xd0] sm:$0xff]
        %v1492 = vld [vmem:[%s5 + $0xd8] sm:$0xff]
        %v1493 = vld [vmem:[%s5 + $0xe0] sm:$0xff]
        %v1494 = vld [vmem:[%s5 + $0xe8] sm:$0xff]
        %v1495 = vld [vmem:[%s5 + $0xf0] sm:$0xff]
        %v1496 = vld [vmem:[%s5 + $0xf8] sm:$0xff]
        %v1497 = vld [vmem:[%s6] sm:$0x3]
        %v1499 = vlaneseq
        %v1500 = vshrl.u32 %v1499, 7
        %v1501 = vsub.s32 0, %v1500
        %v1502 = vrot.slane %v1497, %v1501
        %v1503 = vlaneseq
        %v1504 = vshrl.u32 %v1503, 7
        %v1505 = vsub.s32 1, %v1504
        %v1506 = vrot.slane %v1497, %v1505
        %v1541 = vunpack.c.l.b16 %v1465
        %v1542 = vunpack.c.h.b16 %v1465
        %v1543 = vunpack.c.l.b16 %v1466
        %v1544 = vunpack.c.h.b16 %v1466
        %v1545 = vunpack.c.l.b16 %v1467
        %v1546 = vunpack.c.h.b16 %v1467
        %v1547 = vunpack.c.l.b16 %v1468
        %v1548 = vunpack.c.h.b16 %v1468
        %v1549 = vunpack.c.l.b16 %v1469
        %v1550 = vunpack.c.h.b16 %v1469
        %v1551 = vunpack.c.l.b16 %v1470
        %v1552 = vunpack.c.h.b16 %v1470
        %v1553 = vunpack.c.l.b16 %v1471
        %v1554 = vunpack.c.h.b16 %v1471
        %v1555 = vunpack.c.l.b16 %v1472
        %v1556 = vunpack.c.h.b16 %v1472
        %v1557 = vunpack.c.l.b16 %v1473
        %v1558 = vunpack.c.h.b16 %v1473
        %v1559 = vunpack.c.l.b16 %v1474
        %v1560 = vunpack.c.h.b16 %v1474
        %v1561 = vunpack.c.l.b16 %v1475
        %v1562 = vunpack.c.h.b16 %v1475
        %v1563 = vunpack.c.l.b16 %v1476
        %v1564 = vunpack.c.h.b16 %v1476
        %v1565 = vunpack.c.l.b16 %v1477
        %v1566 = vunpack.c.h.b16 %v1477
        %v1567 = vunpack.c.l.b16 %v1478
        %v1568 = vunpack.c.h.b16 %v1478
        %v1569 = vunpack.c.l.b16 %v1479
        %v1570 = vunpack.c.h.b16 %v1479
        %v1571 = vunpack.c.l.b16 %v1480
        %v1572 = vunpack.c.h.b16 %v1480
        %v1573 = vunpack.c.l.b16 %v1481
        %v1574 = vunpack.c.h.b16 %v1481
        %v1575 = vunpack.c.l.b16 %v1482
        %v1576 = vunpack.c.h.b16 %v1482
        %v1577 = vunpack.c.l.b16 %v1483
        %v1578 = vunpack.c.h.b16 %v1483
        %v1579 = vunpack.c.l.b16 %v1484
        %v1580 = vunpack.c.h.b16 %v1484
        %v1581 = vunpack.c.l.b16 %v1485
        %v1582 = vunpack.c.h.b16 %v1485
        %v1583 = vunpack.c.l.b16 %v1486
        %v1584 = vunpack.c.h.b16 %v1486
        %v1585 = vunpack.c.l.b16 %v1487
        %v1586 = vunpack.c.h.b16 %v1487
        %v1587 = vunpack.c.l.b16 %v1488
        %v1588 = vunpack.c.h.b16 %v1488
        %v1589 = vunpack.c.l.b16 %v1489
        %v1590 = vunpack.c.h.b16 %v1489
        %v1591 = vunpack.c.l.b16 %v1490
        %v1592 = vunpack.c.h.b16 %v1490
        %v1593 = vunpack.c.l.b16 %v1491
        %v1594 = vunpack.c.h.b16 %v1491
        %v1595 = vunpack.c.l.b16 %v1492
        %v1596 = vunpack.c.h.b16 %v1492
        %v1597 = vunpack.c.l.b16 %v1493
        %v1598 = vunpack.c.h.b16 %v1493
        %v1599 = vunpack.c.l.b16 %v1494
        %v1600 = vunpack.c.h.b16 %v1494
        %v1601 = vunpack.c.l.b16 %v1495
        %v1602 = vunpack.c.h.b16 %v1495
        %v1603 = vunpack.c.l.b16 %v1496
        %v1604 = vunpack.c.h.b16 %v1496
        %v1605 = vpack.c.b16 %v1543, %v1541
        %v1606 = vpack.c.b16 %v1544, %v1542
        %v1607 = vpack.c.b16 %v1547, %v1545
        %v1608 = vpack.c.b16 %v1548, %v1546
        %v1609 = vpack.c.b16 %v1551, %v1549
        %v1610 = vpack.c.b16 %v1552, %v1550
        %v1611 = vpack.c.b16 %v1555, %v1553
        %v1612 = vpack.c.b16 %v1556, %v1554
        %v1613 = vpack.c.b16 %v1559, %v1557
        %v1614 = vpack.c.b16 %v1560, %v1558
        %v1615 = vpack.c.b16 %v1563, %v1561
        %v1616 = vpack.c.b16 %v1564, %v1562
        %v1617 = vpack.c.b16 %v1567, %v1565
        %v1618 = vpack.c.b16 %v1568, %v1566
        %v1619 = vpack.c.b16 %v1571, %v1569
        %v1620 = vpack.c.b16 %v1572, %v1570
        %v1621 = vpack.c.b16 %v1575, %v1573
        %v1622 = vpack.c.b16 %v1576, %v1574
        %v1623 = vpack.c.b16 %v1579, %v1577
        %v1624 = vpack.c.b16 %v1580, %v1578
        %v1625 = vpack.c.b16 %v1583, %v1581
        %v1626 = vpack.c.b16 %v1584, %v1582
        %v1627 = vpack.c.b16 %v1587, %v1585
        %v1628 = vpack.c.b16 %v1588, %v1586
        %v1629 = vpack.c.b16 %v1591, %v1589
        %v1630 = vpack.c.b16 %v1592, %v1590
        %v1631 = vpack.c.b16 %v1595, %v1593
        %v1632 = vpack.c.b16 %v1596, %v1594
        %v1633 = vpack.c.b16 %v1599, %v1597
        %v1634 = vpack.c.b16 %v1600, %v1598
        %v1635 = vpack.c.b16 %v1603, %v1601
        %v1636 = vpack.c.b16 %v1604, %v1602
        %1669 = vmatprep.subr.bf16.mxu0 %v1606
        %1670 = vmatpush1.bf16.msra.mxu0 %v1605
        %1671 = vmatprep.subr.bf16.mxu0 %v1608
        %1672 = vmatpush1.bf16.msra.mxu0 %v1607
        %1673 = vmatprep.subr.bf16.mxu0 %v1610
        %1674 = vmatpush1.bf16.msra.mxu0 %v1609
        %1675 = vmatprep.subr.bf16.mxu0 %v1612
        %1676 = vmatpush1.bf16.msra.mxu0 %v1611
        %1677 = vmatprep.subr.bf16.mxu0 %v1614
        %1678 = vmatpush1.bf16.msra.mxu0 %v1613
        %1679 = vmatprep.subr.bf16.mxu0 %v1616
        %1680 = vmatpush1.bf16.msra.mxu0 %v1615
        %1681 = vmatprep.subr.bf16.mxu0 %v1618
        %1682 = vmatpush1.bf16.msra.mxu0 %v1617
        %1683 = vmatprep.subr.bf16.mxu0 %v1620
        %1684 = vmatpush1.bf16.msra.mxu0 %v1619
        %1685 = vmatprep.subr.bf16.mxu0 %v1622
        %1686 = vmatpush1.bf16.msra.mxu0 %v1621
        %1687 = vmatprep.subr.bf16.mxu0 %v1624
        %1688 = vmatpush1.bf16.msra.mxu0 %v1623
        %1689 = vmatprep.subr.bf16.mxu0 %v1626
        %1690 = vmatpush1.bf16.msra.mxu0 %v1625
        %1691 = vmatprep.subr.bf16.mxu0 %v1628
        %1692 = vmatpush1.bf16.msra.mxu0 %v1627
        %1693 = vmatprep.subr.bf16.mxu0 %v1630
        %1694 = vmatpush1.bf16.msra.mxu0 %v1629
        %1695 = vmatprep.subr.bf16.mxu0 %v1632
        %1696 = vmatpush1.bf16.msra.mxu0 %v1631
        %1697 = vmatprep.subr.bf16.mxu0 %v1634
        %1698 = vmatpush1.bf16.msra.mxu0 %v1633
        %1699 = vmatprep.subr.bf16.mxu0 %v1636
        %1700 = vmatpush1.bf16.msra.mxu0 %v1635
        %1701 = vmatprep.mubr.bf16.mxu0 %v1464
        %1702 = vmatmul.mubr.bf16.gmra.mrb[0].mxu0 %v1463
        %v1703 = vpop.f32.mrb[0].mxu0
        %v1704 = vadd.f32 %v1502, %v1703
        %v1705 = vpop.f32.mrb[0].mxu0
        %v1706 = vadd.f32 %v1506, %v1705
        %v1707 = vpop.f32.mrb[0].mxu0
        %v1708 = vpop.f32.mrb[0].mxu0
        %1709 = vdwg.mxu0
        %v1710 = vtanh.pop %v1704
        %v1711 = vtanh.pop %v1706
        %v1712 = vld [vmem:[%s7] sm:$0xff]
        %v1713 = vld [vmem:[%s7 + $0x8] sm:$0xff]
        %v1714 = vld [vmem:[%s7 + $0x10] sm:$0xff]
        %v1715 = vld [vmem:[%s7 + $0x18] sm:$0xff]
        %v1716 = vld [vmem:[%s7 + $0x20] sm:$0xff]
        %v1717 = vld [vmem:[%s7 + $0x28] sm:$0xff]
        %v1718 = vld [vmem:[%s7 + $0x30] sm:$0xff]
        %v1719 = vld [vmem:[%s7 + $0x38] sm:$0xff]
        %v1720 = vld [vmem:[%s7 + $0x40] sm:$0xff]
        %v1721 = vld [vmem:[%s7 + $0x48] sm:$0xff]
        %v1722 = vld [vmem:[%s7 + $0x50] sm:$0xff]
        %v1723 = vld [vmem:[%s7 + $0x58] sm:$0xff]
        %v1724 = vld [vmem:[%s7 + $0x60] sm:$0xff]
        %v1725 = vld [vmem:[%s7 + $0x68] sm:$0xff]
        %v1726 = vld [vmem:[%s7 + $0x70] sm:$0xff]
        %v1727 = vld [vmem:[%s7 + $0x78] sm:$0xff]
        %v1728 = vld [vmem:[%s7 + $0x80] sm:$0xff]
        %v1729 = vld [vmem:[%s7 + $0x88] sm:$0xff]
        %v1730 = vld [vmem:[%s7 + $0x90] sm:$0xff]
        %v1731 = vld [vmem:[%s7 + $0x98] sm:$0xff]
        %v1732 = vld [vmem:[%s7 + $0xa0] sm:$0xff]
        %v1733 = vld [vmem:[%s7 + $0xa8] sm:$0xff]
        %v1734 = vld [vmem:[%s7 + $0xb0] sm:$0xff]
        %v1735 = vld [vmem:[%s7 + $0xb8] sm:$0xff]
        %v1736 = vld [vmem:[%s7 + $0xc0] sm:$0xff]
        %v1737 = vld [vmem:[%s7 + $0xc8] sm:$0xff]
        %v1738 = vld [vmem:[%s7 + $0xd0] sm:$0xff]
        %v1739 = vld [vmem:[%s7 + $0xd8] sm:$0xff]
        %v1740 = vld [vmem:[%s7 + $0xe0] sm:$0xff]
        %v1741 = vld [vmem:[%s7 + $0xe8] sm:$0xff]
        %v1742 = vld [vmem:[%s7 + $0xf0] sm:$0xff]
        %v1743 = vld [vmem:[%s7 + $0xf8] sm:$0xff]
        %v1744 = vld [vmem:[#allocation2] sm:$0x1]
        %v1746 = vlaneseq
        %v1747 = vshrl.u32 %v1746, 7
        %v1748 = vsub.s32 0, %v1747
        %v1749 = vrot.slane %v1744, %v1748
        %1750 = vset.pattern.permute.xlu0 0
        %1751 = vperm.xlu0 %1750, %v1749
        %v1752 = vpop.permute.xlu0 %1751
        %1754 = vmatprep.subr.mxu0 0.0
        %1755 = vmatpush1.msra.mxu0 %v1712
        %1756 = vmatprep.subr.mxu0 0.0
        %1757 = vmatpush1.msra.mxu0 %v1713
        %1758 = vmatprep.subr.mxu0 0.0
        %1759 = vmatpush1.msra.mxu0 %v1714
        %1760 = vmatprep.subr.mxu0 0.0
        %1761 = vmatpush1.msra.mxu0 %v1715
        %1762 = vmatprep.subr.mxu0 0.0
        %1763 = vmatpush1.msra.mxu0 %v1716
        %1764 = vmatprep.subr.mxu0 0.0
        %1765 = vmatpush1.msra.mxu0 %v1717
        %1766 = vmatprep.subr.mxu0 0.0
        %1767 = vmatpush1.msra.mxu0 %v1718
        %1768 = vmatprep.subr.mxu0 0.0
        %1769 = vmatpush1.msra.mxu0 %v1719
        %1770 = vmatprep.subr.mxu0 0.0
        %1771 = vmatpush1.msra.mxu0 %v1720
        %1772 = vmatprep.subr.mxu0 0.0
        %1773 = vmatpush1.msra.mxu0 %v1721
        %1774 = vmatprep.subr.mxu0 0.0
        %1775 = vmatpush1.msra.mxu0 %v1722
        %1776 = vmatprep.subr.mxu0 0.0
        %1777 = vmatpush1.msra.mxu0 %v1723
        %1778 = vmatprep.subr.mxu0 0.0
        %1779 = vmatpush1.msra.mxu0 %v1724
        %1780 = vmatprep.subr.mxu0 0.0
        %1781 = vmatpush1.msra.mxu0 %v1725
        %1782 = vmatprep.subr.mxu0 0.0
        %1783 = vmatpush1.msra.mxu0 %v1726
        %1784 = vmatprep.subr.mxu0 0.0
        %1785 = vmatpush1.msra.mxu0 %v1727
        %1786 = vmatprep.subr.mxu0 0.0
        %1787 = vmatpush1.msra.mxu0 %v1728
        %1788 = vmatprep.subr.mxu0 0.0
        %1789 = vmatpush1.msra.mxu0 %v1729
        %1790 = vmatprep.subr.mxu0 0.0
        %1791 = vmatpush1.msra.mxu0 %v1730
        %1792 = vmatprep.subr.mxu0 0.0
        %1793 = vmatpush1.msra.mxu0 %v1731
        %1794 = vmatprep.subr.mxu0 0.0
        %1795 = vmatpush1.msra.mxu0 %v1732
        %1796 = vmatprep.subr.mxu0 0.0
        %1797 = vmatpush1.msra.mxu0 %v1733
        %1798 = vmatprep.subr.mxu0 0.0
        %1799 = vmatpush1.msra.mxu0 %v1734
        %1800 = vmatprep.subr.mxu0 0.0
        %1801 = vmatpush1.msra.mxu0 %v1735
        %1802 = vmatprep.subr.mxu0 0.0
        %1803 = vmatpush1.msra.mxu0 %v1736
        %1804 = vmatprep.subr.mxu0 0.0
        %1805 = vmatpush1.msra.mxu0 %v1737
        %1806 = vmatprep.subr.mxu0 0.0
        %1807 = vmatpush1.msra.mxu0 %v1738
        %1808 = vmatprep.subr.mxu0 0.0
        %1809 = vmatpush1.msra.mxu0 %v1739
        %1810 = vmatprep.subr.mxu0 0.0
        %1811 = vmatpush1.msra.mxu0 %v1740
        %1812 = vmatprep.subr.mxu0 0.0
        %1813 = vmatpush1.msra.mxu0 %v1741
        %1814 = vmatprep.subr.mxu0 0.0
        %1815 = vmatpush1.msra.mxu0 %v1742
        %1816 = vmatprep.subr.mxu0 0.0
        %1817 = vmatpush1.msra.mxu0 %v1743
        %1818 = vmatprep.mubr.f32.mxu0 %v1711
        %1819 = vmatmul.mubr.f32.gmra.mrb[0].mxu0 %v1710
        %v1820 = vpop.f32.mrb[0].mxu0
        %v1821 = vadd.f32 %v1752, %v1820
        %v1822 = vpop.f32.mrb[0].mxu0
        %1823 = vdwg.mxu0
        %v1824 = vld [vmem:[%s384] sm:$0xff]
        %vm1825 = vcmp.eq.s32.totalorder %v1824, 0
        %v1826 = vsel %vm1825, -1e+09, %v1821
        %vm1827 = vcmask 64512
        %v1828 = vsel %vm1827, %v1826, -inf
        %1829 = vmax.xlane.f32.xlu0 %v1828
        %v1830 = vpop.xlane.xlu0 %1829
        %v1831 = vsub.f32 %v1826, %v1830
        %v1832 = vmul.f32 %v1831, 1.442695
        %v1833 = vpow.pop %v1832
        %v1834 = vsel %vm1827, %v1833, 0.0
        %1835 = vadd.xlane.f32.xlu0 %v1834
        %v1836 = vpop.xlane.xlu0 %1835
        %v1837 = vrcp.pop %v1836
        %v1838 = vmul.f32 %v1833, %v1837
        %1840 = vset.pattern.permute.xlu0 0
        %1841 = vperm.xlu0 %1840, %v1838
        %v1842 = vpop.permute.xlu0 %1841
        %v1844 = vmul.f32 %v1842, %v1397
        %v1845 = vadd.f32 %v1844, 0.0
        %1846 = vset.pattern.permute.xlu0 1
        %1847 = vperm.xlu0 %1846, %v1838
        %v1848 = vpop.permute.xlu0 %1847
        %v1850 = vmul.f32 %v1848, %v1406
        %v1851 = vadd.f32 %v1845, %v1850
        %1852 = vset.pattern.permute.xlu0 2
        %1853 = vperm.xlu0 %1852, %v1838
        %v1854 = vpop.permute.xlu0 %1853
        %v1856 = vmul.f32 %v1854, %v1415
        %v1857 = vadd.f32 %v1851, %v1856
        %1858 = vset.pattern.permute.xlu0 3
        %1859 = vperm.xlu0 %1858, %v1838
        %v1860 = vpop.permute.xlu0 %1859
        %v1862 = vmul.f32 %v1860, %v1424
        %v1863 = vadd.f32 %v1857, %v1862
        %1864 = vset.pattern.permute.xlu0 4
        %1865 = vperm.xlu0 %1864, %v1838
        %v1866 = vpop.permute.xlu0 %1865
        %v1868 = vmul.f32 %v1866, %v1425
        %v1869 = vadd.f32 %v1863, %v1868
        %1870 = vset.pattern.permute.xlu0 5
        %1871 = vperm.xlu0 %1870, %v1838
        %v1872 = vpop.permute.xlu0 %1871
        %v1874 = vmul.f32 %v1872, %v1426
        %v1875 = vadd.f32 %v1869, %v1874
        %1876 = vset.pattern.permute.xlu0 6
        %1877 = vperm.xlu0 %1876, %v1838
        %v1878 = vpop.permute.xlu0 %1877
        %v1880 = vmul.f32 %v1878, %v1427
        %v1881 = vadd.f32 %v1875, %v1880
        %1882 = vset.pattern.permute.xlu0 7
        %1883 = vperm.xlu0 %1882, %v1838
        %v1884 = vpop.permute.xlu0 %1883
        %v1886 = vmul.f32 %v1884, %v1428
        %v1887 = vadd.f32 %v1881, %v1886
        %v1888 = vsel %vm420, %v1887, 0.0
        %1889 = vst [vmem:[%s368] sm:$0xff] %v1888
        %s1890 = sand.u32 %s234, 1
        %s1891 = scalar_lea.sflag [#allocation4], %s1890
        %s1892 = sand.u32 %s234, 1
        %s1893 = smul.addr %s1892, 8
        %s1894 = scalar_lea.vmem [#allocation3], %s1893
        %p1895 = scmp.lt.s32.totalorder %s27, 1
        %s1896 = scalar_select %p1895, %s27, 1
        %s1897 = smul.addr %s1896, 2
        %s1898 = smul.addr %s1897, 8
        %s1899 = scalar_lea.vmem %s10, %s1898
        // Predicated region
        $region57: #{sent_level_rnn.1} parent=55 // pred_check
          %p1900 = pneg %p244
        $region58: #{sent_level_rnn.1} parent=55 // pred_check_branch
          %1902 = sbr.rel (%p1900) target = $region60
        $region59: #{sent_level_rnn.1} parent=55 // pred_region
          %s1904 = ssub.s32 128, 128
          %1905 = vsyncadd %s1891, %s1904
          %s1906 = smul.addr %s27, 128
          %s1907 = scalar_lea.hbm %s9, %s1906
          %s1909 = sshll.u32 %s1894, 4
          %s1910 = int_to_ptr.vmem [resolvable:$true] %s1909
          %1912 = dma.vmem_to_hbm [thread:$0]  %s1910, 128, %s1907, %s1891
        $region60: #{sent_level_rnn.1} parent=55 // pred_fallthru
          _
        // Predicated region
        $region61: #{sent_level_rnn.1} parent=55 // pred_check
          %p1913 = pneg %p270
        $region62: #{sent_level_rnn.1} parent=55 // pred_check_branch
          %1915 = sbr.rel (%p1913) target = $region64
        $region63: #{sent_level_rnn.1} parent=55 // pred_region
          _
        $region64: #{sent_level_rnn.1} parent=55 // pred_fallthru
          _
      $region56: #{sent_level_rnn.1} parent=5 // pred_fallthru
        _
      %p1916 = scmp.le.s32.totalorder 2, %s22
      // Predicated region
      $region65: #{sent_level_rnn.1} parent=5 // pred_check
        %p1917 = pneg %p1916
      $region66: #{sent_level_rnn.1} parent=5 // pred_check_branch
        %1919 = sbr.rel (%p1917) target = $region68
      $region67: #{sent_level_rnn.1} parent=5 // pred_region
        %s1920 = ssub.s32 %s22, 2
        // Predicated region
        $region69: #{sent_level_rnn.1} parent=67 // pred_check
          %p1921 = pneg %p250
        $region70: #{sent_level_rnn.1} parent=67 // pred_check_branch
          %1923 = sbr.rel (%p1921) target = $region72
        $region71: #{sent_level_rnn.1} parent=67 // pred_region
          %s1924 = sand.u32 %s235, 1
          %s1925 = scalar_lea.sflag [#allocation4], %s1924
          %s1926 = sand.u32 %s235, 1
          %s1927 = smul.addr %s1926, 8
          %s1928 = scalar_lea.vmem [#allocation3], %s1927
          %1929 = dma.done %s1925, 128
        $region72: #{sent_level_rnn.1} parent=67 // pred_fallthru
          _
        // Predicated region
        $region73: #{sent_level_rnn.1} parent=67 // pred_check
          %p1930 = pneg %p276
        $region74: #{sent_level_rnn.1} parent=67 // pred_check_branch
          %1932 = sbr.rel (%p1930) target = $region76
        $region75: #{sent_level_rnn.1} parent=67 // pred_region
          %p1933 = scmp.lt.s32.totalorder %s28, 1
          %s1934 = scalar_select %p1933, %s28, 1
          %s1935 = smul.addr %s1934, 2
          %s1936 = smul.addr %s1935, 8
          %s1937 = scalar_lea.vmem %s10, %s1936
        $region76: #{sent_level_rnn.1} parent=67 // pred_fallthru
          _
      $region68: #{sent_level_rnn.1} parent=5 // pred_fallthru
        _
    $region6: #{sent_level_rnn.1} parent=1 // loop_footer
      %s26 = sadd.s32 1, %s22
    $region7: #{sent_level_rnn.1} parent=1 // loop_footer_branch
      %21 = sbr.rel target = $region3
    $region8: #{sent_level_rnn.1} parent=1 // loop_exit
      _
    %1938 = vsyncpa [#allocation4], 1
    %s1939 = scalar_lea.sflag [#allocation4], 1
    %1940 = vsyncpa %s1939, 1

</llo_original>
